<compile_context>
chip_gen: v6e
topology: v6e:2x2x1
jax: 0.10.0
libtpu: 0.0.40
codegen_flags: <defaults>
</compile_context>

<pallas_src>
import jax
import jax.numpy as jnp
from jax import lax
from jax.experimental import pallas as pl
from jax.experimental.pallas import tpu as pltpu


def _leaky_relu(v):
    # nn.LeakyReLU(0.1): v if v >= 0 else 0.1 * v
    return jnp.where(v >= 0, v, 0.1 * v)


def decoder_manifold_kernel(
    x_ref,                     # (tile_b, hidden_dim3)  bf16
    wmz_ref, bmz_ref,          # (ZP, hidden_dim3) bf16, (ZP, 1) f32   : linear_m (transposed, sublane-padded)
    wf_ref, bf_ref,            # (hidden_dim3, hidden_dim3) bf16, (1, hidden_dim3) f32 : fused linear∘linear_m
    w1_ref, b1_ref,            # hidden_dim3 -> hidden_dim2
    w2_ref, b2_ref,            # hidden_dim2 -> hidden_dim1
    w3_ref, b3_ref,            # hidden_dim1 -> output_dim
    zt_ref, out_ref,
):
    x = x_ref[...]                                   # bf16

    # z^T = wm @ x^T  (stored transposed & sublane-padded -> lane-dense along batch,
    # no 128-lane padding waste and no wrapper slice pass over a (B,128) slab).
    zt = lax.dot_general(
        wmz_ref[...], x,
        dimension_numbers=(((1,), (1,)), ((), ())),
        preferred_element_type=jnp.float32,
    ) + bmz_ref[...]
    zt_ref[...] = zt.astype(zt_ref.dtype)

    # hidden3 = leaky_relu(linear(linear_m(x))) -- bottleneck folded into one matmul.
    h3 = _leaky_relu(
        jnp.dot(x, wf_ref[...], preferred_element_type=jnp.float32) + bf_ref[...]
    )
    # hidden2 = leaky_relu(linear_1(hidden3))
    h2 = _leaky_relu(
        jnp.dot(h3.astype(jnp.bfloat16), w1_ref[...],
                preferred_element_type=jnp.float32) + b1_ref[...]
    )
    # hidden1 = leaky_relu(linear_2(hidden2))
    h1 = _leaky_relu(
        jnp.dot(h2.astype(jnp.bfloat16), w2_ref[...],
                preferred_element_type=jnp.float32) + b2_ref[...]
    )
    # output = leaky_relu(linear_3(hidden1))
    out = _leaky_relu(
        jnp.dot(h1.astype(jnp.bfloat16), w3_ref[...],
                preferred_element_type=jnp.float32) + b3_ref[...]
    )
    # TODO(synk): emit bf16 outputs here if downstream tolerates it (halves out writeback).
    out_ref[...] = out.astype(out_ref.dtype)


def _dual_tensorcore():
    # v7x exposes 2 TensorCores per chip; a "parallel" grid needs >=2 steps to
    # use both.  Single-TC generations (v5e/v6e) prefer one big tile.
    try:
        kind = jax.devices()[0].device_kind.lower()
    except Exception:
        return False
    return "v7" in kind


def _choose_tile_b(B, desired):
    if B <= 8:
        return B
    tile = min(desired, B)
    if _dual_tensorcore() and B >= 16:
        # Cap at ~B/2 (rounded to the f32 sublane multiple) so the grid has
        # >=2 parallel steps for megacore sharding.
        tile = min(tile, (((B + 1) // 2 + 7) // 8) * 8)
    return max(8, (tile // 8) * 8)


def decoder_manifold_forward(x, params, *, tile_b=512):
    """params: dict with PyTorch-shaped weights (out, in) and biases (out,)."""
    B, hidden_dim3 = x.shape
    manifold_dim = params["wm"].shape[0]
    hidden_dim2 = params["w1"].shape[0]
    hidden_dim1 = params["w2"].shape[0]
    output_dim = params["w3"].shape[0]

    tile_b = _choose_tile_b(B, tile_b)
    grid = (pl.cdiv(B, tile_b),)

    f32, bf16 = jnp.float32, jnp.bfloat16

    # ---- wrapper-side weight prep -------------------------------------------
    # linear_m kept PyTorch-orientation (out, in) so the kernel computes z^T;
    # sublane-pad manifold_dim up to 8 so the z output tile is (8, tile_b).
    ZP = max(8, ((manifold_dim + 7) // 8) * 8)
    wm = params["wm"].astype(f32)                      # (manifold_dim, hidden_dim3)
    bm = params["bm"].astype(f32)                      # (manifold_dim,)
    wmz = jnp.zeros((ZP, hidden_dim3), f32).at[:manifold_dim].set(wm).astype(bf16)
    bmz = jnp.zeros((ZP, 1), f32).at[:manifold_dim, 0].set(bm)

    # Fold linear_m + linear (no activation between) into one linear map
    # (fold in f32, then cast the operand to bf16).
    w0_t = params["w0"].T.astype(f32)                  # (manifold_dim, hidden_dim3)
    b0 = params["b0"].astype(f32)                      # (hidden_dim3,)
    wf = (wm.T @ w0_t).astype(bf16)                    # (hidden_dim3, hidden_dim3)
    bfu = bm[None, :] @ w0_t + b0[None, :]             # (1, hidden_dim3), f32

    w1 = params["w1"].T.astype(bf16)
    b1 = params["b1"].astype(f32)[None, :]
    w2 = params["w2"].T.astype(bf16)
    b2 = params["b2"].astype(f32)[None, :]
    w3 = params["w3"].T.astype(bf16)
    b3 = params["b3"].astype(f32)[None, :]

    x_bf16 = x.astype(bf16)

    # ---- specs ---------------------------------------------------------------
    x_spec = pl.BlockSpec((tile_b, hidden_dim3), lambda i: (i, 0))

    def const_spec(arr):
        return pl.BlockSpec(arr.shape, lambda i: (0, 0))

    zt_spec = pl.BlockSpec((ZP, tile_b), lambda i: (0, i))
    out_spec = pl.BlockSpec((tile_b, output_dim), lambda i: (i, 0))

    # ---- cost estimate (bf16 operands, f32 z/out writeback) ------------------
    flops = 2 * B * (
        hidden_dim3 * ZP
        + hidden_dim3 * hidden_dim3
        + hidden_dim3 * hidden_dim2
        + hidden_dim2 * hidden_dim1
        + hidden_dim1 * output_dim
    )
    weight_bytes = (
        2 * (wmz.size + wf.size + w1.size + w2.size + w3.size)      # bf16
        + 4 * (bmz.size + bfu.size + b1.size + b2.size + b3.size)   # f32
    )
    bytes_accessed = 2 * x_bf16.size + weight_bytes + 4 * (ZP * B + B * output_dim)
    cost = pl.CostEstimate(flops=flops, transcendentals=0,
                           bytes_accessed=bytes_accessed)

    zt, out = pl.pallas_call(
        decoder_manifold_kernel,
        out_shape=(
            jax.ShapeDtypeStruct((ZP, B), jnp.float32),
            jax.ShapeDtypeStruct((B, output_dim), jnp.float32),
        ),
        grid_spec=pltpu.PrefetchScalarGridSpec(
            num_scalar_prefetch=0,
            grid=grid,
            in_specs=[
                x_spec,
                const_spec(wmz), const_spec(bmz),
                const_spec(wf), const_spec(bfu),
                const_spec(w1), const_spec(b1),
                const_spec(w2), const_spec(b2),
                const_spec(w3), const_spec(b3),
            ],
            out_specs=[zt_spec, out_spec],
        ),
        compiler_params=pltpu.CompilerParams(
            dimension_semantics=("parallel",),
        ),
        cost_estimate=cost,
    )(x_bf16, wmz, bmz, wf, bfu, w1, b1, w2, b2, w3, b3)

    z = zt[:manifold_dim, :].T                       # (B, manifold_dim)
    return z, out


def init_params(key, manifold_dim, hidden_dim3, hidden_dim2, hidden_dim1, output_dim):
    """Deterministic synthetic init mirroring nn.Linear shapes: W (out, in), b (out,)."""
    keys = jax.random.split(key, 10)

    def lin(kw, kb, out_d, in_d):
        scale = 1.0 / jnp.sqrt(in_d)
        w = jax.random.uniform(kw, (out_d, in_d), jnp.float32, -scale, scale)
        b = jax.random.uniform(kb, (out_d,), jnp.float32, -scale, scale)
        return w, b

    wm, bm = lin(keys[0], keys[1], manifold_dim, hidden_dim3)
    w0, b0 = lin(keys[2], keys[3], hidden_dim3, manifold_dim)
    w1, b1 = lin(keys[4], keys[5], hidden_dim2, hidden_dim3)
    w2, b2 = lin(keys[6], keys[7], hidden_dim1, hidden_dim2)
    w3, b3 = lin(keys[8], keys[9], output_dim, hidden_dim1)
    return dict(wm=wm, bm=bm, w0=w0, b0=b0, w1=w1, b1=b1,
                w2=w2, b2=b2, w3=w3, b3=b3)


def reference_forward(x, p):
    """Pure-JAX f32 reference replicating the PyTorch forward exactly."""
    lrelu = lambda v: jnp.where(v >= 0, v, 0.1 * v)
    z = x @ p["wm"].T + p["bm"]
    h3 = lrelu(z @ p["w0"].T + p["b0"])
    h2 = lrelu(h3 @ p["w1"].T + p["b1"])
    h1 = lrelu(h2 @ p["w2"].T + p["b2"])
    out = lrelu(h1 @ p["w3"].T + p["b3"])
    return z, out


def reference_forward_bf16(x, p):
    """Mirrors the kernel's math: bf16 operands, f32 accumulate, fused bottleneck."""
    f32, bf16 = jnp.float32, jnp.bfloat16
    lrelu = lambda v: jnp.where(v >= 0, v, 0.1 * v)
    mm = lambda a, w: jnp.dot(a.astype(bf16), w.astype(bf16),
                              preferred_element_type=f32)
    wm = p["wm"].astype(f32)
    bm = p["bm"].astype(f32)
    w0_t = p["w0"].T.astype(f32)
    wf = wm.T @ w0_t
    bfu = bm[None, :] @ w0_t + p["b0"].astype(f32)[None, :]
    xb = x.astype(bf16)
    z = mm(xb, wm.T) + bm
    h3 = lrelu(mm(xb, wf) + bfu)
    h2 = lrelu(mm(h3, p["w1"].T) + p["b1"].astype(f32))
    h1 = lrelu(mm(h2, p["w2"].T) + p["b2"].astype(f32))
    out = lrelu(mm(h1, p["w3"].T) + p["b3"].astype(f32))
    return z, out


if __name__ == "__main__":
    # Small feature dims consistent with the module's constructor; batch sized
    # so the "parallel" grid can have >=2 steps on dual-TC chips.
    manifold_dim = 4
    hidden_dim3 = 32
    hidden_dim2 = 64
    hidden_dim1 = 64
    output_dim = 128
    batch = 512

    key = jax.random.PRNGKey(0)
    kx, kp = jax.random.split(key)
    x = jax.random.normal(kx, (batch, hidden_dim3), jnp.float32)
    params = init_params(kp, manifold_dim, hidden_dim3, hidden_dim2,
                         hidden_dim1, output_dim)

    z, out = decoder_manifold_forward(x, params, tile_b=512)
    jax.block_until_ready((z, out))

    assert z.shape == (batch, manifold_dim)
    assert out.shape == (batch, output_dim)

    # Tight check vs a reference that mirrors the kernel's bf16-operand /
    # f32-accumulate math and the fused bottleneck.
    z_m, out_m = reference_forward_bf16(x, params)
    assert jnp.allclose(z, z_m, atol=2e-3, rtol=2e-3)
    assert jnp.allclose(out, out_m, atol=2e-3, rtol=2e-3)

    # Loose check vs the exact f32 PyTorch-semantics forward; tolerance covers
    # bf16 operand rounding plus the bottleneck-fusion reassociation.
    z_ref, out_ref = reference_forward(x, params)
    assert jnp.allclose(z, z_ref, atol=5e-2, rtol=5e-2)
    assert jnp.allclose(out, out_ref, atol=5e-2, rtol=5e-2)

    print("KERNEL_OK")
</pallas_src>

<mosaic_0001>
module attributes {stable_mosaic.version = 11 : i64} {
  func.func @decoder_manifold_kernel(%arg0: i32, %arg1: memref<512x32xbf16, #tpu.memory_space<vmem>>, %arg2: memref<8x32xbf16, #tpu.memory_space<vmem>>, %arg3: memref<8x1xf32, #tpu.memory_space<vmem>>, %arg4: memref<32x32xbf16, #tpu.memory_space<vmem>>, %arg5: memref<1x32xf32, #tpu.memory_space<vmem>>, %arg6: memref<32x64xbf16, #tpu.memory_space<vmem>>, %arg7: memref<1x64xf32, #tpu.memory_space<vmem>>, %arg8: memref<64x64xbf16, #tpu.memory_space<vmem>>, %arg9: memref<1x64xf32, #tpu.memory_space<vmem>>, %arg10: memref<64x128xbf16, #tpu.memory_space<vmem>>, %arg11: memref<1x128xf32, #tpu.memory_space<vmem>>, %arg12: memref<8x512xf32, #tpu.memory_space<vmem>>, %arg13: memref<512x128xf32, #tpu.memory_space<vmem>>) attributes {dimension_semantics = [#tpu.dimension_semantics<parallel>], iteration_bounds = array<i64: 1>, scalar_prefetch = 0 : i64, scratch_operands = 0 : i64, tpu.core_type = #tpu.core_type<tc>, window_params = [{transform_indices = @transform_0, window_bounds = array<i64: 512, 32>}, {pipeline_mode = #tpu.pipeline_mode<synchronous>, transform_indices = @transform_1, window_bounds = array<i64: 8, 32>}, {pipeline_mode = #tpu.pipeline_mode<synchronous>, transform_indices = @transform_2, window_bounds = array<i64: 8, 1>}, {pipeline_mode = #tpu.pipeline_mode<synchronous>, transform_indices = @transform_3, window_bounds = array<i64: 32, 32>}, {pipeline_mode = #tpu.pipeline_mode<synchronous>, transform_indices = @transform_4, window_bounds = array<i64: 1, 32>}, {pipeline_mode = #tpu.pipeline_mode<synchronous>, transform_indices = @transform_5, window_bounds = array<i64: 32, 64>}, {pipeline_mode = #tpu.pipeline_mode<synchronous>, transform_indices = @transform_6, window_bounds = array<i64: 1, 64>}, {pipeline_mode = #tpu.pipeline_mode<synchronous>, transform_indices = @transform_7, window_bounds = array<i64: 64, 64>}, {pipeline_mode = #tpu.pipeline_mode<synchronous>, transform_indices = @transform_8, window_bounds = array<i64: 1, 64>}, {pipeline_mode = #tpu.pipeline_mode<synchronous>, transform_indices = @transform_9, window_bounds = array<i64: 64, 128>}, {pipeline_mode = #tpu.pipeline_mode<synchronous>, transform_indices = @transform_10, window_bounds = array<i64: 1, 128>}, {transform_indices = @transform_11, window_bounds = array<i64: 8, 512>}, {transform_indices = @transform_12, window_bounds = array<i64: 512, 128>}]} {
    %c0 = arith.constant 0 : index
    %c0_0 = arith.constant 0 : index
    %0 = vector.load %arg1[%c0, %c0_0] : memref<512x32xbf16, #tpu.memory_space<vmem>>, vector<512x32xbf16>
    %c0_1 = arith.constant 0 : index
    %c0_2 = arith.constant 0 : index
    %1 = vector.load %arg2[%c0_1, %c0_2] : memref<8x32xbf16, #tpu.memory_space<vmem>>, vector<8x32xbf16>
    %cst = arith.constant dense<0.000000e+00> : vector<8x512xf32>
    %2 = tpu.matmul %1, %0, %cst {dimension_numbers = #tpu.dot_dimension_numbers<[1], [1], [0], [0], [0, 0, 1, 0], [], []>} : vector<8x32xbf16>, vector<512x32xbf16>, vector<8x512xf32> -> vector<8x512xf32>
    %c0_3 = arith.constant 0 : index
    %c0_4 = arith.constant 0 : index
    %3 = vector.load %arg3[%c0_3, %c0_4] : memref<8x1xf32, #tpu.memory_space<vmem>>, vector<8x1xf32>
    %4 = vector.broadcast %3 : vector<8x1xf32> to vector<8x512xf32>
    %5 = arith.addf %2, %4 : vector<8x512xf32>
    %c0_5 = arith.constant 0 : index
    %c0_6 = arith.constant 0 : index
    %6 = vector.load %arg12[%c0_5, %c0_6] : memref<8x512xf32, #tpu.memory_space<vmem>>, vector<8x512xf32>
    tpu.vector_store %arg12[%c0_5, %c0_6], %5 {strides = array<i32>} : memref<8x512xf32, #tpu.memory_space<vmem>>, vector<8x512xf32>,
    %c0_7 = arith.constant 0 : index
    %c0_8 = arith.constant 0 : index
    %7 = vector.load %arg4[%c0_7, %c0_8] : memref<32x32xbf16, #tpu.memory_space<vmem>>, vector<32x32xbf16>
    %cst_9 = arith.constant dense<0.000000e+00> : vector<512x32xf32>
    %8 = tpu.matmul %0, %7, %cst_9 {dimension_numbers = #tpu.dot_dimension_numbers<[1], [0], [0], [1], [0, 0, 1, 1], [], []>} : vector<512x32xbf16>, vector<32x32xbf16>, vector<512x32xf32> -> vector<512x32xf32>
    %c0_10 = arith.constant 0 : index
    %c0_11 = arith.constant 0 : index
    %9 = vector.load %arg5[%c0_10, %c0_11] : memref<1x32xf32, #tpu.memory_space<vmem>>, vector<1x32xf32>
    %10 = vector.broadcast %9 : vector<1x32xf32> to vector<512x32xf32>
    %11 = arith.addf %8, %10 : vector<512x32xf32>
    %cst_12 = arith.constant 0.000000e+00 : f32
    %12 = vector.broadcast %cst_12 : f32 to vector<512x32xf32>
    %13 = arith.cmpf oge, %11, %12 : vector<512x32xf32>
    %cst_13 = arith.constant 1.000000e-01 : f32
    %14 = vector.broadcast %cst_13 : f32 to vector<512x32xf32>
    %15 = arith.mulf %14, %11 : vector<512x32xf32>
    %16 = arith.select %13, %11, %15 : vector<512x32xi1>, vector<512x32xf32>
    %17 = arith.truncf %16 : vector<512x32xf32> to vector<512x32xbf16>
    %c0_14 = arith.constant 0 : index
    %c0_15 = arith.constant 0 : index
    %18 = vector.load %arg6[%c0_14, %c0_15] : memref<32x64xbf16, #tpu.memory_space<vmem>>, vector<32x64xbf16>
    %cst_16 = arith.constant dense<0.000000e+00> : vector<512x64xf32>
    %19 = tpu.matmul %17, %18, %cst_16 {dimension_numbers = #tpu.dot_dimension_numbers<[1], [0], [0], [1], [0, 0, 1, 1], [], []>} : vector<512x32xbf16>, vector<32x64xbf16>, vector<512x64xf32> -> vector<512x64xf32>
    %c0_17 = arith.constant 0 : index
    %c0_18 = arith.constant 0 : index
    %20 = vector.load %arg7[%c0_17, %c0_18] : memref<1x64xf32, #tpu.memory_space<vmem>>, vector<1x64xf32>
    %21 = vector.broadcast %20 : vector<1x64xf32> to vector<512x64xf32>
    %22 = arith.addf %19, %21 : vector<512x64xf32>
    %cst_19 = arith.constant 0.000000e+00 : f32
    %23 = vector.broadcast %cst_19 : f32 to vector<512x64xf32>
    %24 = arith.cmpf oge, %22, %23 : vector<512x64xf32>
    %cst_20 = arith.constant 1.000000e-01 : f32
    %25 = vector.broadcast %cst_20 : f32 to vector<512x64xf32>
    %26 = arith.mulf %25, %22 : vector<512x64xf32>
    %27 = arith.select %24, %22, %26 : vector<512x64xi1>, vector<512x64xf32>
    %28 = arith.truncf %27 : vector<512x64xf32> to vector<512x64xbf16>
    %c0_21 = arith.constant 0 : index
    %c0_22 = arith.constant 0 : index
    %29 = vector.load %arg8[%c0_21, %c0_22] : memref<64x64xbf16, #tpu.memory_space<vmem>>, vector<64x64xbf16>
    %cst_23 = arith.constant dense<0.000000e+00> : vector<512x64xf32>
    %30 = tpu.matmul %28, %29, %cst_23 {dimension_numbers = #tpu.dot_dimension_numbers<[1], [0], [0], [1], [0, 0, 1, 1], [], []>} : vector<512x64xbf16>, vector<64x64xbf16>, vector<512x64xf32> -> vector<512x64xf32>
    %c0_24 = arith.constant 0 : index
    %c0_25 = arith.constant 0 : index
    %31 = vector.load %arg9[%c0_24, %c0_25] : memref<1x64xf32, #tpu.memory_space<vmem>>, vector<1x64xf32>
    %32 = vector.broadcast %31 : vector<1x64xf32> to vector<512x64xf32>
    %33 = arith.addf %30, %32 : vector<512x64xf32>
    %cst_26 = arith.constant 0.000000e+00 : f32
    %34 = vector.broadcast %cst_26 : f32 to vector<512x64xf32>
    %35 = arith.cmpf oge, %33, %34 : vector<512x64xf32>
    %cst_27 = arith.constant 1.000000e-01 : f32
    %36 = vector.broadcast %cst_27 : f32 to vector<512x64xf32>
    %37 = arith.mulf %36, %33 : vector<512x64xf32>
    %38 = arith.select %35, %33, %37 : vector<512x64xi1>, vector<512x64xf32>
    %39 = arith.truncf %38 : vector<512x64xf32> to vector<512x64xbf16>
    %c0_28 = arith.constant 0 : index
    %c0_29 = arith.constant 0 : index
    %40 = vector.load %arg10[%c0_28, %c0_29] : memref<64x128xbf16, #tpu.memory_space<vmem>>, vector<64x128xbf16>
    %cst_30 = arith.constant dense<0.000000e+00> : vector<512x128xf32>
    %41 = tpu.matmul %39, %40, %cst_30 {dimension_numbers = #tpu.dot_dimension_numbers<[1], [0], [0], [1], [0, 0, 1, 1], [], []>} : vector<512x64xbf16>, vector<64x128xbf16>, vector<512x128xf32> -> vector<512x128xf32>
    %c0_31 = arith.constant 0 : index
    %c0_32 = arith.constant 0 : index
    %42 = vector.load %arg11[%c0_31, %c0_32] : memref<1x128xf32, #tpu.memory_space<vmem>>, vector<1x128xf32>
    %43 = vector.broadcast %42 : vector<1x128xf32> to vector<512x128xf32>
    %44 = arith.addf %41, %43 : vector<512x128xf32>
    %cst_33 = arith.constant 0.000000e+00 : f32
    %45 = vector.broadcast %cst_33 : f32 to vector<512x128xf32>
    %46 = arith.cmpf oge, %44, %45 : vector<512x128xf32>
    %cst_34 = arith.constant 1.000000e-01 : f32
    %47 = vector.broadcast %cst_34 : f32 to vector<512x128xf32>
    %48 = arith.mulf %47, %44 : vector<512x128xf32>
    %49 = arith.select %46, %44, %48 : vector<512x128xi1>, vector<512x128xf32>
    %c0_35 = arith.constant 0 : index
    %c0_36 = arith.constant 0 : index
    %50 = vector.load %arg13[%c0_35, %c0_36] : memref<512x128xf32, #tpu.memory_space<vmem>>, vector<512x128xf32>
    tpu.vector_store %arg13[%c0_35, %c0_36], %49 {strides = array<i32>} : memref<512x128xf32, #tpu.memory_space<vmem>>, vector<512x128xf32>,
    return
  }
  func.func @transform_0(%arg0: i32) -> (i32, i32) {
    %c0_i32 = arith.constant 0 : i32
    %c0_i32_0 = arith.constant 0 : i32
    return %arg0, %c0_i32 : i32, i32
  }
  func.func @transform_1(%arg0: i32) -> (i32, i32) {
    %c0_i32 = arith.constant 0 : i32
    %c0_i32_0 = arith.constant 0 : i32
    %c0_i32_1 = arith.constant 0 : i32
    return %c0_i32, %c0_i32_0 : i32, i32
  }
  func.func @transform_2(%arg0: i32) -> (i32, i32) {
    %c0_i32 = arith.constant 0 : i32
    %c0_i32_0 = arith.constant 0 : i32
    %c0_i32_1 = arith.constant 0 : i32
    return %c0_i32, %c0_i32_0 : i32, i32
  }
  func.func @transform_3(%arg0: i32) -> (i32, i32) {
    %c0_i32 = arith.constant 0 : i32
    %c0_i32_0 = arith.constant 0 : i32
    %c0_i32_1 = arith.constant 0 : i32
    return %c0_i32, %c0_i32_0 : i32, i32
  }
  func.func @transform_4(%arg0: i32) -> (i32, i32) {
    %c0_i32 = arith.constant 0 : i32
    %c0_i32_0 = arith.constant 0 : i32
    %c0_i32_1 = arith.constant 0 : i32
    return %c0_i32, %c0_i32_0 : i32, i32
  }
  func.func @transform_5(%arg0: i32) -> (i32, i32) {
    %c0_i32 = arith.constant 0 : i32
    %c0_i32_0 = arith.constant 0 : i32
    %c0_i32_1 = arith.constant 0 : i32
    return %c0_i32, %c0_i32_0 : i32, i32
  }
  func.func @transform_6(%arg0: i32) -> (i32, i32) {
    %c0_i32 = arith.constant 0 : i32
    %c0_i32_0 = arith.constant 0 : i32
    %c0_i32_1 = arith.constant 0 : i32
    return %c0_i32, %c0_i32_0 : i32, i32
  }
  func.func @transform_7(%arg0: i32) -> (i32, i32) {
    %c0_i32 = arith.constant 0 : i32
    %c0_i32_0 = arith.constant 0 : i32
    %c0_i32_1 = arith.constant 0 : i32
    return %c0_i32, %c0_i32_0 : i32, i32
  }
  func.func @transform_8(%arg0: i32) -> (i32, i32) {
    %c0_i32 = arith.constant 0 : i32
    %c0_i32_0 = arith.constant 0 : i32
    %c0_i32_1 = arith.constant 0 : i32
    return %c0_i32, %c0_i32_0 : i32, i32
  }
  func.func @transform_9(%arg0: i32) -> (i32, i32) {
    %c0_i32 = arith.constant 0 : i32
    %c0_i32_0 = arith.constant 0 : i32
    %c0_i32_1 = arith.constant 0 : i32
    return %c0_i32, %c0_i32_0 : i32, i32
  }
  func.func @transform_10(%arg0: i32) -> (i32, i32) {
    %c0_i32 = arith.constant 0 : i32
    %c0_i32_0 = arith.constant 0 : i32
    %c0_i32_1 = arith.constant 0 : i32
    return %c0_i32, %c0_i32_0 : i32, i32
  }
  func.func @transform_11(%arg0: i32) -> (i32, i32) {
    %c0_i32 = arith.constant 0 : i32
    %c0_i32_0 = arith.constant 0 : i32
    return %c0_i32, %arg0 : i32, i32
  }
  func.func @transform_12(%arg0: i32) -> (i32, i32) {
    %c0_i32 = arith.constant 0 : i32
    %c0_i32_0 = arith.constant 0 : i32
    return %arg0, %c0_i32 : i32, i32
  }
}

</mosaic_0001>

<llo_original>
// kernel: tpu_custom_call.1
$region0: #{tpu_custom_call.1}
  #allocation0 [shape = 'u32[]', space=smem, size = 0x4, offset = 0x4, fixed_abs, tag = 'smem constant byte address 0x4 - core index']
  #allocation1 [shape = 'u32[144,128]{1,0:T(1,128)}', space=vmem, size = 0x12000, scoped, tag = 'internal scratch']
  %s0 = inlined_call_operand.vmem [shape: bf16[512,32], index: 0, kind: input, shape index: {}]
  %s1 = inlined_call_operand.vmem [shape: bf16[8,32], index: 1, kind: input, shape index: {}]
  %s2 = inlined_call_operand.vmem [shape: f32[8,1], index: 2, kind: input, shape index: {}]
  %s3 = inlined_call_operand.vmem [shape: bf16[32,32], index: 3, kind: input, shape index: {}]
  %s4 = inlined_call_operand.vmem [shape: f32[1,32], index: 4, kind: input, shape index: {}]
  %s5 = inlined_call_operand.vmem [shape: bf16[32,64], index: 5, kind: input, shape index: {}]
  %s6 = inlined_call_operand.vmem [shape: f32[1,64], index: 6, kind: input, shape index: {}]
  %s7 = inlined_call_operand.vmem [shape: bf16[64,64], index: 7, kind: input, shape index: {}]
  %s8 = inlined_call_operand.vmem [shape: f32[1,64], index: 8, kind: input, shape index: {}]
  %s9 = inlined_call_operand.vmem [shape: bf16[64,128], index: 9, kind: input, shape index: {}]
  %s10 = inlined_call_operand.vmem [shape: f32[1,128], index: 10, kind: input, shape index: {}]
  %s11 = inlined_call_operand.hbm [shape: f32[8,512], index: 11, kind: output, shape index: {0}]
  %s12 = inlined_call_operand.hbm [shape: f32[512,128], index: 12, kind: output, shape index: {1}]
  %13 = xla_tuple %s11, %s12
  %s14 = sld [smem:[#allocation0]]
  $region62: #{tpu_custom_call.1} parent=0
    _
  %s16 = ssub.s32 1, %s14
  %s17 = scalar_select 0, %s16, %s14
  $region1: #{tpu_custom_call.1} parent=0
    #allocation2 [shape = 'u8[16384]{0}', space=vmem, size = 0x4000, scoped, tag = 'output window, operand 0, single buffered']
    #allocation3 [shape = 's32[1]{0}', space=sflag, size = 0x4, scoped, tag = 'scoped memory for tpu_custom_call.1']
    #allocation4 [shape = 'u8[262144]{0}', space=vmem, size = 0x40000, scoped, tag = 'output window, operand 1, single buffered']
    #allocation5 [shape = 's32[1]{0}', space=sflag, size = 0x4, scoped, tag = 'scoped memory for tpu_custom_call.1']
    %18 = vsyncpa [#allocation3], 0
    %19 = vsyncpa [#allocation5], 0
    // Predicated region
    $region2: #{tpu_custom_call.1} parent=1 // pred_check
      _
    $region3: #{tpu_custom_call.1} parent=1 // pred_check_branch
      %21 = sbr.rel (0) target = $region5
    $region4: #{tpu_custom_call.1} parent=1 // pred_region
      _
    $region5: #{tpu_custom_call.1} parent=1 // pred_fallthru
      _
    // Predicated region
    $region6: #{tpu_custom_call.1} parent=1 // pred_check
      _
    $region7: #{tpu_custom_call.1} parent=1 // pred_check_branch
      %23 = sbr.rel (0) target = $region9
    $region8: #{tpu_custom_call.1} parent=1 // pred_region
      _
    $region9: #{tpu_custom_call.1} parent=1 // pred_fallthru
      _
    // Predicated region
    $region10: #{tpu_custom_call.1} parent=1 // pred_check
      _
    $region11: #{tpu_custom_call.1} parent=1 // pred_check_branch
      %25 = sbr.rel (0) target = $region13
    $region12: #{tpu_custom_call.1} parent=1 // pred_region
      _
    $region13: #{tpu_custom_call.1} parent=1 // pred_fallthru
      _
    // Predicated region
    $region14: #{tpu_custom_call.1} parent=1 // pred_check
      _
    $region15: #{tpu_custom_call.1} parent=1 // pred_check_branch
      %27 = sbr.rel (0) target = $region17
    $region16: #{tpu_custom_call.1} parent=1 // pred_region
      _
    $region17: #{tpu_custom_call.1} parent=1 // pred_fallthru
      _
    // Predicated region
    $region18: #{tpu_custom_call.1} parent=1 // pred_check
      _
    $region19: #{tpu_custom_call.1} parent=1 // pred_check_branch
      %29 = sbr.rel (0) target = $region21
    $region20: #{tpu_custom_call.1} parent=1 // pred_region
      _
    $region21: #{tpu_custom_call.1} parent=1 // pred_fallthru
      _
    // Predicated region
    $region22: #{tpu_custom_call.1} parent=1 // pred_check
      _
    $region23: #{tpu_custom_call.1} parent=1 // pred_check_branch
      %31 = sbr.rel (0) target = $region25
    $region24: #{tpu_custom_call.1} parent=1 // pred_region
      _
    $region25: #{tpu_custom_call.1} parent=1 // pred_fallthru
      _
    // Predicated region
    $region26: #{tpu_custom_call.1} parent=1 // pred_check
      _
    $region27: #{tpu_custom_call.1} parent=1 // pred_check_branch
      %33 = sbr.rel (0) target = $region29
    $region28: #{tpu_custom_call.1} parent=1 // pred_region
      _
    $region29: #{tpu_custom_call.1} parent=1 // pred_fallthru
      _
    // Predicated region
    $region30: #{tpu_custom_call.1} parent=1 // pred_check
      _
    $region31: #{tpu_custom_call.1} parent=1 // pred_check_branch
      %35 = sbr.rel (0) target = $region33
    $region32: #{tpu_custom_call.1} parent=1 // pred_region
      _
    $region33: #{tpu_custom_call.1} parent=1 // pred_fallthru
      _
    // Predicated region
    $region34: #{tpu_custom_call.1} parent=1 // pred_check
      _
    $region35: #{tpu_custom_call.1} parent=1 // pred_check_branch
      %37 = sbr.rel (0) target = $region37
    $region36: #{tpu_custom_call.1} parent=1 // pred_region
      _
    $region37: #{tpu_custom_call.1} parent=1 // pred_fallthru
      _
    // Predicated region
    $region38: #{tpu_custom_call.1} parent=1 // pred_check
      _
    $region39: #{tpu_custom_call.1} parent=1 // pred_check_branch
      %39 = sbr.rel (0) target = $region41
    $region40: #{tpu_custom_call.1} parent=1 // pred_region
      _
    $region41: #{tpu_custom_call.1} parent=1 // pred_fallthru
      _
    // Predicated region
    $region42: #{tpu_custom_call.1} parent=1 // pred_check
      _
    $region43: #{tpu_custom_call.1} parent=1 // pred_check_branch
      %41 = sbr.rel (0) target = $region45
    $region44: #{tpu_custom_call.1} parent=1 // pred_region
      _
    $region45: #{tpu_custom_call.1} parent=1 // pred_fallthru
      _
    %v43 = vld [vmem:[%s0] sm:$0xf]
    %v44 = vld [vmem:[%s0 + $0x4] sm:$0xf]
    %v45 = vld [vmem:[%s0 + $0x8] sm:$0xf]
    %v46 = vld [vmem:[%s0 + $0xc] sm:$0xf]
    %v47 = vld [vmem:[%s0 + $0x10] sm:$0xf]
    %v48 = vld [vmem:[%s0 + $0x14] sm:$0xf]
    %v49 = vld [vmem:[%s0 + $0x18] sm:$0xf]
    %v50 = vld [vmem:[%s0 + $0x1c] sm:$0xf]
    %v51 = vld [vmem:[%s0 + $0x20] sm:$0xf]
    %v52 = vld [vmem:[%s0 + $0x24] sm:$0xf]
    %v53 = vld [vmem:[%s0 + $0x28] sm:$0xf]
    %v54 = vld [vmem:[%s0 + $0x2c] sm:$0xf]
    %v55 = vld [vmem:[%s0 + $0x30] sm:$0xf]
    %v56 = vld [vmem:[%s0 + $0x34] sm:$0xf]
    %v57 = vld [vmem:[%s0 + $0x38] sm:$0xf]
    %v58 = vld [vmem:[%s0 + $0x3c] sm:$0xf]
    %v59 = vld [vmem:[%s0 + $0x40] sm:$0xf]
    %v60 = vld [vmem:[%s0 + $0x44] sm:$0xf]
    %v61 = vld [vmem:[%s0 + $0x48] sm:$0xf]
    %v62 = vld [vmem:[%s0 + $0x4c] sm:$0xf]
    %v63 = vld [vmem:[%s0 + $0x50] sm:$0xf]
    %v64 = vld [vmem:[%s0 + $0x54] sm:$0xf]
    %v65 = vld [vmem:[%s0 + $0x58] sm:$0xf]
    %v66 = vld [vmem:[%s0 + $0x5c] sm:$0xf]
    %v67 = vld [vmem:[%s0 + $0x60] sm:$0xf]
    %v68 = vld [vmem:[%s0 + $0x64] sm:$0xf]
    %v69 = vld [vmem:[%s0 + $0x68] sm:$0xf]
    %v70 = vld [vmem:[%s0 + $0x6c] sm:$0xf]
    %v71 = vld [vmem:[%s0 + $0x70] sm:$0xf]
    %v72 = vld [vmem:[%s0 + $0x74] sm:$0xf]
    %v73 = vld [vmem:[%s0 + $0x78] sm:$0xf]
    %v74 = vld [vmem:[%s0 + $0x7c] sm:$0xf]
    %v75 = vld [vmem:[%s0 + $0x80] sm:$0xf]
    %v76 = vld [vmem:[%s0 + $0x84] sm:$0xf]
    %v77 = vld [vmem:[%s0 + $0x88] sm:$0xf]
    %v78 = vld [vmem:[%s0 + $0x8c] sm:$0xf]
    %v79 = vld [vmem:[%s0 + $0x90] sm:$0xf]
    %v80 = vld [vmem:[%s0 + $0x94] sm:$0xf]
    %v81 = vld [vmem:[%s0 + $0x98] sm:$0xf]
    %v82 = vld [vmem:[%s0 + $0x9c] sm:$0xf]
    %v83 = vld [vmem:[%s0 + $0xa0] sm:$0xf]
    %v84 = vld [vmem:[%s0 + $0xa4] sm:$0xf]
    %v85 = vld [vmem:[%s0 + $0xa8] sm:$0xf]
    %v86 = vld [vmem:[%s0 + $0xac] sm:$0xf]
    %v87 = vld [vmem:[%s0 + $0xb0] sm:$0xf]
    %v88 = vld [vmem:[%s0 + $0xb4] sm:$0xf]
    %v89 = vld [vmem:[%s0 + $0xb8] sm:$0xf]
    %v90 = vld [vmem:[%s0 + $0xbc] sm:$0xf]
    %v91 = vld [vmem:[%s0 + $0xc0] sm:$0xf]
    %v92 = vld [vmem:[%s0 + $0xc4] sm:$0xf]
    %v93 = vld [vmem:[%s0 + $0xc8] sm:$0xf]
    %v94 = vld [vmem:[%s0 + $0xcc] sm:$0xf]
    %v95 = vld [vmem:[%s0 + $0xd0] sm:$0xf]
    %v96 = vld [vmem:[%s0 + $0xd4] sm:$0xf]
    %v97 = vld [vmem:[%s0 + $0xd8] sm:$0xf]
    %v98 = vld [vmem:[%s0 + $0xdc] sm:$0xf]
    %v99 = vld [vmem:[%s0 + $0xe0] sm:$0xf]
    %v100 = vld [vmem:[%s0 + $0xe4] sm:$0xf]
    %v101 = vld [vmem:[%s0 + $0xe8] sm:$0xf]
    %v102 = vld [vmem:[%s0 + $0xec] sm:$0xf]
    %v103 = vld [vmem:[%s0 + $0xf0] sm:$0xf]
    %v104 = vld [vmem:[%s0 + $0xf4] sm:$0xf]
    %v105 = vld [vmem:[%s0 + $0xf8] sm:$0xf]
    %v106 = vld [vmem:[%s0 + $0xfc] sm:$0xf]
    %v107 = vld [vmem:[%s1] sm:$0xf]
    %v108 = vld [vmem:[%s2] sm:$0xff]
    %110 = vset.pattern.permute.xlu0 0
    %111 = vperm.xlu0 %110, %v108
    %v112 = vpop.permute.xlu0 %111
    %v178 = vunpack.c.l.b16 %v43
    %v179 = vunpack.c.l.b16 %v44
    %v180 = vunpack.c.l.b16 %v45
    %v181 = vunpack.c.l.b16 %v46
    %v182 = vunpack.c.l.b16 %v47
    %v183 = vunpack.c.l.b16 %v48
    %v184 = vunpack.c.l.b16 %v49
    %v185 = vunpack.c.l.b16 %v50
    %v186 = vunpack.c.l.b16 %v51
    %v187 = vunpack.c.l.b16 %v52
    %v188 = vunpack.c.l.b16 %v53
    %v189 = vunpack.c.l.b16 %v54
    %v190 = vunpack.c.l.b16 %v55
    %v191 = vunpack.c.l.b16 %v56
    %v192 = vunpack.c.l.b16 %v57
    %v193 = vunpack.c.l.b16 %v58
    %v194 = vunpack.c.l.b16 %v59
    %v195 = vunpack.c.l.b16 %v60
    %v196 = vunpack.c.l.b16 %v61
    %v197 = vunpack.c.l.b16 %v62
    %v198 = vunpack.c.l.b16 %v63
    %v199 = vunpack.c.l.b16 %v64
    %v200 = vunpack.c.l.b16 %v65
    %v201 = vunpack.c.l.b16 %v66
    %v202 = vunpack.c.l.b16 %v67
    %v203 = vunpack.c.l.b16 %v68
    %v204 = vunpack.c.l.b16 %v69
    %v205 = vunpack.c.l.b16 %v70
    %v206 = vunpack.c.l.b16 %v71
    %v207 = vunpack.c.l.b16 %v72
    %v208 = vunpack.c.l.b16 %v73
    %v209 = vunpack.c.l.b16 %v74
    %v210 = vunpack.c.l.b16 %v75
    %v211 = vunpack.c.l.b16 %v76
    %v212 = vunpack.c.l.b16 %v77
    %v213 = vunpack.c.l.b16 %v78
    %v214 = vunpack.c.l.b16 %v79
    %v215 = vunpack.c.l.b16 %v80
    %v216 = vunpack.c.l.b16 %v81
    %v217 = vunpack.c.l.b16 %v82
    %v218 = vunpack.c.l.b16 %v83
    %v219 = vunpack.c.l.b16 %v84
    %v220 = vunpack.c.l.b16 %v85
    %v221 = vunpack.c.l.b16 %v86
    %v222 = vunpack.c.l.b16 %v87
    %v223 = vunpack.c.l.b16 %v88
    %v224 = vunpack.c.l.b16 %v89
    %v225 = vunpack.c.l.b16 %v90
    %v226 = vunpack.c.l.b16 %v91
    %v227 = vunpack.c.l.b16 %v92
    %v228 = vunpack.c.l.b16 %v93
    %v229 = vunpack.c.l.b16 %v94
    %v230 = vunpack.c.l.b16 %v95
    %v231 = vunpack.c.l.b16 %v96
    %v232 = vunpack.c.l.b16 %v97
    %v233 = vunpack.c.l.b16 %v98
    %v234 = vunpack.c.l.b16 %v99
    %v235 = vunpack.c.l.b16 %v100
    %v236 = vunpack.c.l.b16 %v101
    %v237 = vunpack.c.l.b16 %v102
    %v238 = vunpack.c.l.b16 %v103
    %v239 = vunpack.c.l.b16 %v104
    %v240 = vunpack.c.l.b16 %v105
    %v241 = vunpack.c.l.b16 %v106
    %v242 = vpack.c.b16 %v179, %v178
    %v243 = vpack.c.b16 %v181, %v180
    %v244 = vpack.c.b16 %v183, %v182
    %v245 = vpack.c.b16 %v185, %v184
    %v246 = vpack.c.b16 %v187, %v186
    %v247 = vpack.c.b16 %v189, %v188
    %v248 = vpack.c.b16 %v191, %v190
    %v249 = vpack.c.b16 %v193, %v192
    %v250 = vpack.c.b16 %v195, %v194
    %v251 = vpack.c.b16 %v197, %v196
    %v252 = vpack.c.b16 %v199, %v198
    %v253 = vpack.c.b16 %v201, %v200
    %v254 = vpack.c.b16 %v203, %v202
    %v255 = vpack.c.b16 %v205, %v204
    %v256 = vpack.c.b16 %v207, %v206
    %v257 = vpack.c.b16 %v209, %v208
    %v258 = vpack.c.b16 %v211, %v210
    %v259 = vpack.c.b16 %v213, %v212
    %v260 = vpack.c.b16 %v215, %v214
    %v261 = vpack.c.b16 %v217, %v216
    %v262 = vpack.c.b16 %v219, %v218
    %v263 = vpack.c.b16 %v221, %v220
    %v264 = vpack.c.b16 %v223, %v222
    %v265 = vpack.c.b16 %v225, %v224
    %v266 = vpack.c.b16 %v227, %v226
    %v267 = vpack.c.b16 %v229, %v228
    %v268 = vpack.c.b16 %v231, %v230
    %v269 = vpack.c.b16 %v233, %v232
    %v270 = vpack.c.b16 %v235, %v234
    %v271 = vpack.c.b16 %v237, %v236
    %v272 = vpack.c.b16 %v239, %v238
    %v273 = vpack.c.b16 %v241, %v240
    %vm274 = vcmask 261120
    %v276 = vsel %vm274, %v107, 0
    %v279 = vsel %vm274, %v242, 0
    %v282 = vsel %vm274, %v243, 0
    %v285 = vsel %vm274, %v244, 0
    %v288 = vsel %vm274, %v245, 0
    %v291 = vsel %vm274, %v246, 0
    %v294 = vsel %vm274, %v247, 0
    %v297 = vsel %vm274, %v248, 0
    %v300 = vsel %vm274, %v249, 0
    %v303 = vsel %vm274, %v250, 0
    %v306 = vsel %vm274, %v251, 0
    %v309 = vsel %vm274, %v252, 0
    %v312 = vsel %vm274, %v253, 0
    %v315 = vsel %vm274, %v254, 0
    %v318 = vsel %vm274, %v255, 0
    %v321 = vsel %vm274, %v256, 0
    %v324 = vsel %vm274, %v257, 0
    %v327 = vsel %vm274, %v258, 0
    %v330 = vsel %vm274, %v259, 0
    %v333 = vsel %vm274, %v260, 0
    %v336 = vsel %vm274, %v261, 0
    %v339 = vsel %vm274, %v262, 0
    %v342 = vsel %vm274, %v263, 0
    %v345 = vsel %vm274, %v264, 0
    %v348 = vsel %vm274, %v265, 0
    %v351 = vsel %vm274, %v266, 0
    %v354 = vsel %vm274, %v267, 0
    %v357 = vsel %vm274, %v268, 0
    %v360 = vsel %vm274, %v269, 0
    %v363 = vsel %vm274, %v270, 0
    %v366 = vsel %vm274, %v271, 0
    %v369 = vsel %vm274, %v272, 0
    %v372 = vsel %vm274, %v273, 0
    %374 = vmatprep.subr.bf16.mxu0 0
    %375 = vmatpush1.bf16.xpose.msra.mxu0 %v300
    %376 = vmatprep.subr.bf16.mxu0 0
    %377 = vmatpush1.bf16.xpose.msra.mxu0 %v297
    %378 = vmatprep.subr.bf16.mxu0 0
    %379 = vmatpush1.bf16.xpose.msra.mxu0 %v294
    %380 = vmatprep.subr.bf16.mxu0 0
    %381 = vmatpush1.bf16.xpose.msra.mxu0 %v291
    %382 = vmatprep.subr.bf16.mxu0 0
    %383 = vmatpush1.bf16.xpose.msra.mxu0 %v288
    %384 = vmatprep.subr.bf16.mxu0 0
    %385 = vmatpush1.bf16.xpose.msra.mxu0 %v285
    %386 = vmatprep.subr.bf16.mxu0 0
    %387 = vmatpush1.bf16.xpose.msra.mxu0 %v282
    %388 = vmatprep.subr.bf16.mxu0 0
    %389 = vmatpush1.bf16.xpose.msra.mxu0 %v279
    %390 = vmatprep.subr.bf16.mxu0 0
    %391 = vmatpush2.bf16.xpose.msra.mxu0 %v324
    %392 = vmatprep.subr.bf16.mxu0 0
    %393 = vmatpush2.bf16.xpose.msra.mxu0 %v321
    %394 = vmatprep.subr.bf16.mxu0 0
    %395 = vmatpush2.bf16.xpose.msra.mxu0 %v318
    %396 = vmatprep.subr.bf16.mxu0 0
    %397 = vmatpush2.bf16.xpose.msra.mxu0 %v315
    %398 = vmatprep.subr.bf16.mxu0 0
    %399 = vmatpush2.bf16.xpose.msra.mxu0 %v312
    %400 = vmatprep.subr.bf16.mxu0 0
    %401 = vmatpush2.bf16.xpose.msra.mxu0 %v309
    %402 = vmatprep.subr.bf16.mxu0 0
    %403 = vmatpush2.bf16.xpose.msra.mxu0 %v306
    %404 = vmatprep.subr.bf16.mxu0 0
    %405 = vmatpush2.bf16.xpose.msra.mxu0 %v303
    %406 = vmatprep.mubr.bf16.mxu0 0
    %407 = vmatmul.mubr.bf16.gmra.mxu0 %v276
    %v408 = vpop.f32.mrf.mxu0
    %v409 = vadd.f32 %v112, %v408
    %v410 = vpop.f32.mrf.mxu0
    %v411 = vadd.f32 %v112, %v410
    %v412 = vpop.f32.mrf.mxu0
    %v413 = vpop.f32.mrf.mxu0
    %414 = vdwg.mxu0
    %415 = vmatprep.subr.bf16.mxu0 0
    %416 = vmatpush1.bf16.xpose.msra.mxu0 %v348
    %417 = vmatprep.subr.bf16.mxu0 0
    %418 = vmatpush1.bf16.xpose.msra.mxu0 %v345
    %419 = vmatprep.subr.bf16.mxu0 0
    %420 = vmatpush1.bf16.xpose.msra.mxu0 %v342
    %421 = vmatprep.subr.bf16.mxu0 0
    %422 = vmatpush1.bf16.xpose.msra.mxu0 %v339
    %423 = vmatprep.subr.bf16.mxu0 0
    %424 = vmatpush1.bf16.xpose.msra.mxu0 %v336
    %425 = vmatprep.subr.bf16.mxu0 0
    %426 = vmatpush1.bf16.xpose.msra.mxu0 %v333
    %427 = vmatprep.subr.bf16.mxu0 0
    %428 = vmatpush1.bf16.xpose.msra.mxu0 %v330
    %429 = vmatprep.subr.bf16.mxu0 0
    %430 = vmatpush1.bf16.xpose.msra.mxu0 %v327
    %431 = vmatprep.subr.bf16.mxu0 0
    %432 = vmatpush2.bf16.xpose.msra.mxu0 %v372
    %433 = vmatprep.subr.bf16.mxu0 0
    %434 = vmatpush2.bf16.xpose.msra.mxu0 %v369
    %435 = vmatprep.subr.bf16.mxu0 0
    %436 = vmatpush2.bf16.xpose.msra.mxu0 %v366
    %437 = vmatprep.subr.bf16.mxu0 0
    %438 = vmatpush2.bf16.xpose.msra.mxu0 %v363
    %439 = vmatprep.subr.bf16.mxu0 0
    %440 = vmatpush2.bf16.xpose.msra.mxu0 %v360
    %441 = vmatprep.subr.bf16.mxu0 0
    %442 = vmatpush2.bf16.xpose.msra.mxu0 %v357
    %443 = vmatprep.subr.bf16.mxu0 0
    %444 = vmatpush2.bf16.xpose.msra.mxu0 %v354
    %445 = vmatprep.subr.bf16.mxu0 0
    %446 = vmatpush2.bf16.xpose.msra.mxu0 %v351
    %447 = vmatprep.mubr.bf16.mxu0 0
    %448 = vmatmul.mubr.bf16.gmra.mxu0 %v276
    %v449 = vpop.f32.mrf.mxu0
    %v450 = vadd.f32 %v112, %v449
    %v451 = vpop.f32.mrf.mxu0
    %v452 = vadd.f32 %v112, %v451
    %v453 = vpop.f32.mrf.mxu0
    %v454 = vpop.f32.mrf.mxu0
    %455 = vdwg.mxu0
    %456 = vst [vmem:[#allocation2] sm:$0xff] %v409
    %457 = vst [vmem:[#allocation2 + $0x8] sm:$0xff] %v411
    %458 = vst [vmem:[#allocation2 + $0x10] sm:$0xff] %v450
    %459 = vst [vmem:[#allocation2 + $0x18] sm:$0xff] %v452
    %v460 = vld [vmem:[%s3] sm:$0xf]
    %v461 = vld [vmem:[%s3 + $0x4] sm:$0xf]
    %v462 = vld [vmem:[%s3 + $0x8] sm:$0xf]
    %v463 = vld [vmem:[%s3 + $0xc] sm:$0xf]
    %v464 = vld [vmem:[%s4] sm:$0x1]
    %v466 = vlaneseq
    %v467 = vshrl.u32 %v466, 7
    %v468 = vsub.s32 0, %v467
    %v469 = vrot.slane %v464, %v468
    %v475 = vunpack.c.l.b16 %v460
    %v476 = vunpack.c.l.b16 %v461
    %v477 = vunpack.c.l.b16 %v462
    %v478 = vunpack.c.l.b16 %v463
    %v479 = vpack.c.b16 %v476, %v475
    %v480 = vpack.c.b16 %v478, %v477
    %483 = vmatprep.subr.bf16.mxu0 0
    %484 = vmatpush1.bf16.msra.mxu0 0
    %485 = vmatprep.subr.bf16.mxu0 0
    %486 = vmatpush1.bf16.msra.mxu0 0
    %487 = vmatprep.subr.bf16.mxu0 0
    %488 = vmatpush1.bf16.msra.mxu0 0
    %489 = vmatprep.subr.bf16.mxu0 0
    %490 = vmatpush1.bf16.msra.mxu0 0
    %491 = vmatprep.subr.bf16.mxu0 0
    %492 = vmatpush1.bf16.msra.mxu0 0
    %493 = vmatprep.subr.bf16.mxu0 0
    %494 = vmatpush1.bf16.msra.mxu0 0
    %495 = vmatprep.subr.bf16.mxu0 0
    %496 = vmatpush1.bf16.msra.mxu0 %v480
    %497 = vmatprep.subr.bf16.mxu0 0
    %498 = vmatpush1.bf16.msra.mxu0 %v479
    %499 = vmatprep.subr.bf16.mxu0 0
    %500 = vmatpush2.bf16.msra.mxu0 0
    %501 = vmatprep.subr.bf16.mxu0 0
    %502 = vmatpush2.bf16.msra.mxu0 0
    %503 = vmatprep.subr.bf16.mxu0 0
    %504 = vmatpush2.bf16.msra.mxu0 0
    %505 = vmatprep.subr.bf16.mxu0 0
    %506 = vmatpush2.bf16.msra.mxu0 0
    %507 = vmatprep.subr.bf16.mxu0 0
    %508 = vmatpush2.bf16.msra.mxu0 0
    %509 = vmatprep.subr.bf16.mxu0 0
    %510 = vmatpush2.bf16.msra.mxu0 0
    %511 = vmatprep.subr.bf16.mxu0 0
    %512 = vmatpush2.bf16.msra.mxu0 0
    %513 = vmatprep.subr.bf16.mxu0 0
    %514 = vmatpush2.bf16.msra.mxu0 0
    %515 = vmatprep.mubr.bf16.mxu0 0
    %516 = vmatmul.mubr.bf16.gmra.mxu0 %v279
    %v517 = vpop.f32.mrf.mxu0
    %v518 = vadd.f32 %v469, %v517
    %v519 = vpop.f32.mrf.mxu0
    %v520 = vpop.f32.mrf.mxu0
    %v521 = vadd.f32 %v469, %v520
    %v522 = vpop.f32.mrf.mxu0
    %523 = vmatprep.mubr.bf16.mxu0 0
    %524 = vmatmul.mubr.bf16.gmra.mxu0 %v282
    %v525 = vpop.f32.mrf.mxu0
    %v526 = vadd.f32 %v469, %v525
    %v527 = vpop.f32.mrf.mxu0
    %v528 = vpop.f32.mrf.mxu0
    %v529 = vadd.f32 %v469, %v528
    %v530 = vpop.f32.mrf.mxu0
    %531 = vmatprep.mubr.bf16.mxu0 0
    %532 = vmatmul.mubr.bf16.gmra.mxu0 %v285
    %v533 = vpop.f32.mrf.mxu0
    %v534 = vadd.f32 %v469, %v533
    %v535 = vpop.f32.mrf.mxu0
    %v536 = vpop.f32.mrf.mxu0
    %v537 = vadd.f32 %v469, %v536
    %v538 = vpop.f32.mrf.mxu0
    %539 = vmatprep.mubr.bf16.mxu0 0
    %540 = vmatmul.mubr.bf16.gmra.mxu0 %v288
    %v541 = vpop.f32.mrf.mxu0
    %v542 = vadd.f32 %v469, %v541
    %v543 = vpop.f32.mrf.mxu0
    %v544 = vpop.f32.mrf.mxu0
    %v545 = vadd.f32 %v469, %v544
    %v546 = vpop.f32.mrf.mxu0
    %547 = vmatprep.mubr.bf16.mxu0 0
    %548 = vmatmul.mubr.bf16.gmra.mxu0 %v291
    %v549 = vpop.f32.mrf.mxu0
    %v550 = vadd.f32 %v469, %v549
    %v551 = vpop.f32.mrf.mxu0
    %v552 = vpop.f32.mrf.mxu0
    %v553 = vadd.f32 %v469, %v552
    %v554 = vpop.f32.mrf.mxu0
    %555 = vmatprep.mubr.bf16.mxu0 0
    %556 = vmatmul.mubr.bf16.gmra.mxu0 %v294
    %v557 = vpop.f32.mrf.mxu0
    %v558 = vadd.f32 %v469, %v557
    %v559 = vpop.f32.mrf.mxu0
    %v560 = vpop.f32.mrf.mxu0
    %v561 = vadd.f32 %v469, %v560
    %v562 = vpop.f32.mrf.mxu0
    %563 = vmatprep.mubr.bf16.mxu0 0
    %564 = vmatmul.mubr.bf16.gmra.mxu0 %v297
    %v565 = vpop.f32.mrf.mxu0
    %v566 = vadd.f32 %v469, %v565
    %v567 = vpop.f32.mrf.mxu0
    %v568 = vpop.f32.mrf.mxu0
    %v569 = vadd.f32 %v469, %v568
    %v570 = vpop.f32.mrf.mxu0
    %571 = vmatprep.mubr.bf16.mxu0 0
    %572 = vmatmul.mubr.bf16.gmra.mxu0 %v300
    %v573 = vpop.f32.mrf.mxu0
    %v574 = vadd.f32 %v469, %v573
    %v575 = vpop.f32.mrf.mxu0
    %v576 = vpop.f32.mrf.mxu0
    %v577 = vadd.f32 %v469, %v576
    %v578 = vpop.f32.mrf.mxu0
    %579 = vmatprep.mubr.bf16.mxu0 0
    %580 = vmatmul.mubr.bf16.gmra.mxu0 %v303
    %v581 = vpop.f32.mrf.mxu0
    %v582 = vadd.f32 %v469, %v581
    %v583 = vpop.f32.mrf.mxu0
    %v584 = vpop.f32.mrf.mxu0
    %v585 = vadd.f32 %v469, %v584
    %v586 = vpop.f32.mrf.mxu0
    %587 = vmatprep.mubr.bf16.mxu0 0
    %588 = vmatmul.mubr.bf16.gmra.mxu0 %v306
    %v589 = vpop.f32.mrf.mxu0
    %v590 = vadd.f32 %v469, %v589
    %v591 = vpop.f32.mrf.mxu0
    %v592 = vpop.f32.mrf.mxu0
    %v593 = vadd.f32 %v469, %v592
    %v594 = vpop.f32.mrf.mxu0
    %595 = vmatprep.mubr.bf16.mxu0 0
    %596 = vmatmul.mubr.bf16.gmra.mxu0 %v309
    %v597 = vpop.f32.mrf.mxu0
    %v598 = vadd.f32 %v469, %v597
    %v599 = vpop.f32.mrf.mxu0
    %v600 = vpop.f32.mrf.mxu0
    %v601 = vadd.f32 %v469, %v600
    %v602 = vpop.f32.mrf.mxu0
    %603 = vmatprep.mubr.bf16.mxu0 0
    %604 = vmatmul.mubr.bf16.gmra.mxu0 %v312
    %v605 = vpop.f32.mrf.mxu0
    %v606 = vadd.f32 %v469, %v605
    %v607 = vpop.f32.mrf.mxu0
    %v608 = vpop.f32.mrf.mxu0
    %v609 = vadd.f32 %v469, %v608
    %v610 = vpop.f32.mrf.mxu0
    %611 = vmatprep.mubr.bf16.mxu0 0
    %612 = vmatmul.mubr.bf16.gmra.mxu0 %v315
    %v613 = vpop.f32.mrf.mxu0
    %v614 = vadd.f32 %v469, %v613
    %v615 = vpop.f32.mrf.mxu0
    %v616 = vpop.f32.mrf.mxu0
    %v617 = vadd.f32 %v469, %v616
    %v618 = vpop.f32.mrf.mxu0
    %619 = vmatprep.mubr.bf16.mxu0 0
    %620 = vmatmul.mubr.bf16.gmra.mxu0 %v318
    %v621 = vpop.f32.mrf.mxu0
    %v622 = vadd.f32 %v469, %v621
    %v623 = vpop.f32.mrf.mxu0
    %v624 = vpop.f32.mrf.mxu0
    %v625 = vadd.f32 %v469, %v624
    %v626 = vpop.f32.mrf.mxu0
    %627 = vmatprep.mubr.bf16.mxu0 0
    %628 = vmatmul.mubr.bf16.gmra.mxu0 %v321
    %v629 = vpop.f32.mrf.mxu0
    %v630 = vadd.f32 %v469, %v629
    %v631 = vpop.f32.mrf.mxu0
    %v632 = vpop.f32.mrf.mxu0
    %v633 = vadd.f32 %v469, %v632
    %v634 = vpop.f32.mrf.mxu0
    %635 = vmatprep.mubr.bf16.mxu0 0
    %636 = vmatmul.mubr.bf16.gmra.mxu0 %v324
    %v637 = vpop.f32.mrf.mxu0
    %v638 = vadd.f32 %v469, %v637
    %v639 = vpop.f32.mrf.mxu0
    %v640 = vpop.f32.mrf.mxu0
    %v641 = vadd.f32 %v469, %v640
    %v642 = vpop.f32.mrf.mxu0
    %643 = vmatprep.mubr.bf16.mxu0 0
    %644 = vmatmul.mubr.bf16.gmra.mxu0 %v327
    %v645 = vpop.f32.mrf.mxu0
    %v646 = vadd.f32 %v469, %v645
    %v647 = vpop.f32.mrf.mxu0
    %v648 = vpop.f32.mrf.mxu0
    %v649 = vadd.f32 %v469, %v648
    %v650 = vpop.f32.mrf.mxu0
    %651 = vmatprep.mubr.bf16.mxu0 0
    %652 = vmatmul.mubr.bf16.gmra.mxu0 %v330
    %v653 = vpop.f32.mrf.mxu0
    %v654 = vadd.f32 %v469, %v653
    %v655 = vpop.f32.mrf.mxu0
    %v656 = vpop.f32.mrf.mxu0
    %v657 = vadd.f32 %v469, %v656
    %v658 = vpop.f32.mrf.mxu0
    %659 = vmatprep.mubr.bf16.mxu0 0
    %660 = vmatmul.mubr.bf16.gmra.mxu0 %v333
    %v661 = vpop.f32.mrf.mxu0
    %v662 = vadd.f32 %v469, %v661
    %v663 = vpop.f32.mrf.mxu0
    %v664 = vpop.f32.mrf.mxu0
    %v665 = vadd.f32 %v469, %v664
    %v666 = vpop.f32.mrf.mxu0
    %667 = vmatprep.mubr.bf16.mxu0 0
    %668 = vmatmul.mubr.bf16.gmra.mxu0 %v336
    %v669 = vpop.f32.mrf.mxu0
    %v670 = vadd.f32 %v469, %v669
    %v671 = vpop.f32.mrf.mxu0
    %v672 = vpop.f32.mrf.mxu0
    %v673 = vadd.f32 %v469, %v672
    %v674 = vpop.f32.mrf.mxu0
    %675 = vmatprep.mubr.bf16.mxu0 0
    %676 = vmatmul.mubr.bf16.gmra.mxu0 %v339
    %v677 = vpop.f32.mrf.mxu0
    %v678 = vadd.f32 %v469, %v677
    %v679 = vpop.f32.mrf.mxu0
    %v680 = vpop.f32.mrf.mxu0
    %v681 = vadd.f32 %v469, %v680
    %v682 = vpop.f32.mrf.mxu0
    %683 = vmatprep.mubr.bf16.mxu0 0
    %684 = vmatmul.mubr.bf16.gmra.mxu0 %v342
    %v685 = vpop.f32.mrf.mxu0
    %v686 = vadd.f32 %v469, %v685
    %v687 = vpop.f32.mrf.mxu0
    %v688 = vpop.f32.mrf.mxu0
    %v689 = vadd.f32 %v469, %v688
    %v690 = vpop.f32.mrf.mxu0
    %691 = vmatprep.mubr.bf16.mxu0 0
    %692 = vmatmul.mubr.bf16.gmra.mxu0 %v345
    %v693 = vpop.f32.mrf.mxu0
    %v694 = vadd.f32 %v469, %v693
    %v695 = vpop.f32.mrf.mxu0
    %v696 = vpop.f32.mrf.mxu0
    %v697 = vadd.f32 %v469, %v696
    %v698 = vpop.f32.mrf.mxu0
    %699 = vmatprep.mubr.bf16.mxu0 0
    %700 = vmatmul.mubr.bf16.gmra.mxu0 %v348
    %v701 = vpop.f32.mrf.mxu0
    %v702 = vadd.f32 %v469, %v701
    %v703 = vpop.f32.mrf.mxu0
    %v704 = vpop.f32.mrf.mxu0
    %v705 = vadd.f32 %v469, %v704
    %v706 = vpop.f32.mrf.mxu0
    %707 = vmatprep.mubr.bf16.mxu0 0
    %708 = vmatmul.mubr.bf16.gmra.mxu0 %v351
    %v709 = vpop.f32.mrf.mxu0
    %v710 = vadd.f32 %v469, %v709
    %v711 = vpop.f32.mrf.mxu0
    %v712 = vpop.f32.mrf.mxu0
    %v713 = vadd.f32 %v469, %v712
    %v714 = vpop.f32.mrf.mxu0
    %715 = vmatprep.mubr.bf16.mxu0 0
    %716 = vmatmul.mubr.bf16.gmra.mxu0 %v354
    %v717 = vpop.f32.mrf.mxu0
    %v718 = vadd.f32 %v469, %v717
    %v719 = vpop.f32.mrf.mxu0
    %v720 = vpop.f32.mrf.mxu0
    %v721 = vadd.f32 %v469, %v720
    %v722 = vpop.f32.mrf.mxu0
    %723 = vmatprep.mubr.bf16.mxu0 0
    %724 = vmatmul.mubr.bf16.gmra.mxu0 %v357
    %v725 = vpop.f32.mrf.mxu0
    %v726 = vadd.f32 %v469, %v725
    %v727 = vpop.f32.mrf.mxu0
    %v728 = vpop.f32.mrf.mxu0
    %v729 = vadd.f32 %v469, %v728
    %v730 = vpop.f32.mrf.mxu0
    %731 = vmatprep.mubr.bf16.mxu0 0
    %732 = vmatmul.mubr.bf16.gmra.mxu0 %v360
    %v733 = vpop.f32.mrf.mxu0
    %v734 = vadd.f32 %v469, %v733
    %v735 = vpop.f32.mrf.mxu0
    %v736 = vpop.f32.mrf.mxu0
    %v737 = vadd.f32 %v469, %v736
    %v738 = vpop.f32.mrf.mxu0
    %739 = vmatprep.mubr.bf16.mxu0 0
    %740 = vmatmul.mubr.bf16.gmra.mxu0 %v363
    %v741 = vpop.f32.mrf.mxu0
    %v742 = vadd.f32 %v469, %v741
    %v743 = vpop.f32.mrf.mxu0
    %v744 = vpop.f32.mrf.mxu0
    %v745 = vadd.f32 %v469, %v744
    %v746 = vpop.f32.mrf.mxu0
    %747 = vmatprep.mubr.bf16.mxu0 0
    %748 = vmatmul.mubr.bf16.gmra.mxu0 %v366
    %v749 = vpop.f32.mrf.mxu0
    %v750 = vadd.f32 %v469, %v749
    %v751 = vpop.f32.mrf.mxu0
    %v752 = vpop.f32.mrf.mxu0
    %v753 = vadd.f32 %v469, %v752
    %v754 = vpop.f32.mrf.mxu0
    %755 = vmatprep.mubr.bf16.mxu0 0
    %756 = vmatmul.mubr.bf16.gmra.mxu0 %v369
    %v757 = vpop.f32.mrf.mxu0
    %v758 = vadd.f32 %v469, %v757
    %v759 = vpop.f32.mrf.mxu0
    %v760 = vpop.f32.mrf.mxu0
    %v761 = vadd.f32 %v469, %v760
    %v762 = vpop.f32.mrf.mxu0
    %763 = vmatprep.mubr.bf16.mxu0 0
    %764 = vmatmul.mubr.bf16.gmra.mxu0 %v372
    %v765 = vpop.f32.mrf.mxu0
    %v766 = vadd.f32 %v469, %v765
    %v767 = vpop.f32.mrf.mxu0
    %v768 = vpop.f32.mrf.mxu0
    %v769 = vadd.f32 %v469, %v768
    %v770 = vpop.f32.mrf.mxu0
    %771 = vdwg.mxu0
    %vm772 = vcmp.ge.f32.partialorder %v518, 0.0
    %vm773 = vcmp.ge.f32.partialorder %v521, 0.0
    %vm774 = vcmp.ge.f32.partialorder %v526, 0.0
    %vm775 = vcmp.ge.f32.partialorder %v529, 0.0
    %vm776 = vcmp.ge.f32.partialorder %v534, 0.0
    %vm777 = vcmp.ge.f32.partialorder %v537, 0.0
    %vm778 = vcmp.ge.f32.partialorder %v542, 0.0
    %vm779 = vcmp.ge.f32.partialorder %v545, 0.0
    %vm780 = vcmp.ge.f32.partialorder %v550, 0.0
    %vm781 = vcmp.ge.f32.partialorder %v553, 0.0
    %vm782 = vcmp.ge.f32.partialorder %v558, 0.0
    %vm783 = vcmp.ge.f32.partialorder %v561, 0.0
    %vm784 = vcmp.ge.f32.partialorder %v566, 0.0
    %vm785 = vcmp.ge.f32.partialorder %v569, 0.0
    %vm786 = vcmp.ge.f32.partialorder %v574, 0.0
    %vm787 = vcmp.ge.f32.partialorder %v577, 0.0
    %vm788 = vcmp.ge.f32.partialorder %v582, 0.0
    %vm789 = vcmp.ge.f32.partialorder %v585, 0.0
    %vm790 = vcmp.ge.f32.partialorder %v590, 0.0
    %vm791 = vcmp.ge.f32.partialorder %v593, 0.0
    %vm792 = vcmp.ge.f32.partialorder %v598, 0.0
    %vm793 = vcmp.ge.f32.partialorder %v601, 0.0
    %vm794 = vcmp.ge.f32.partialorder %v606, 0.0
    %vm795 = vcmp.ge.f32.partialorder %v609, 0.0
    %vm796 = vcmp.ge.f32.partialorder %v614, 0.0
    %vm797 = vcmp.ge.f32.partialorder %v617, 0.0
    %vm798 = vcmp.ge.f32.partialorder %v622, 0.0
    %vm799 = vcmp.ge.f32.partialorder %v625, 0.0
    %vm800 = vcmp.ge.f32.partialorder %v630, 0.0
    %vm801 = vcmp.ge.f32.partialorder %v633, 0.0
    %vm802 = vcmp.ge.f32.partialorder %v638, 0.0
    %vm803 = vcmp.ge.f32.partialorder %v641, 0.0
    %vm804 = vcmp.ge.f32.partialorder %v646, 0.0
    %vm805 = vcmp.ge.f32.partialorder %v649, 0.0
    %vm806 = vcmp.ge.f32.partialorder %v654, 0.0
    %vm807 = vcmp.ge.f32.partialorder %v657, 0.0
    %vm808 = vcmp.ge.f32.partialorder %v662, 0.0
    %vm809 = vcmp.ge.f32.partialorder %v665, 0.0
    %vm810 = vcmp.ge.f32.partialorder %v670, 0.0
    %vm811 = vcmp.ge.f32.partialorder %v673, 0.0
    %vm812 = vcmp.ge.f32.partialorder %v678, 0.0
    %vm813 = vcmp.ge.f32.partialorder %v681, 0.0
    %vm814 = vcmp.ge.f32.partialorder %v686, 0.0
    %vm815 = vcmp.ge.f32.partialorder %v689, 0.0
    %vm816 = vcmp.ge.f32.partialorder %v694, 0.0
    %vm817 = vcmp.ge.f32.partialorder %v697, 0.0
    %vm818 = vcmp.ge.f32.partialorder %v702, 0.0
    %vm819 = vcmp.ge.f32.partialorder %v705, 0.0
    %vm820 = vcmp.ge.f32.partialorder %v710, 0.0
    %vm821 = vcmp.ge.f32.partialorder %v713, 0.0
    %vm822 = vcmp.ge.f32.partialorder %v718, 0.0
    %vm823 = vcmp.ge.f32.partialorder %v721, 0.0
    %vm824 = vcmp.ge.f32.partialorder %v726, 0.0
    %vm825 = vcmp.ge.f32.partialorder %v729, 0.0
    %vm826 = vcmp.ge.f32.partialorder %v734, 0.0
    %vm827 = vcmp.ge.f32.partialorder %v737, 0.0
    %vm828 = vcmp.ge.f32.partialorder %v742, 0.0
    %vm829 = vcmp.ge.f32.partialorder %v745, 0.0
    %vm830 = vcmp.ge.f32.partialorder %v750, 0.0
    %vm831 = vcmp.ge.f32.partialorder %v753, 0.0
    %vm832 = vcmp.ge.f32.partialorder %v758, 0.0
    %vm833 = vcmp.ge.f32.partialorder %v761, 0.0
    %vm834 = vcmp.ge.f32.partialorder %v766, 0.0
    %vm835 = vcmp.ge.f32.partialorder %v769, 0.0
    %v836 = vmul.f32 %v518, 0.1
    %v837 = vmul.f32 %v521, 0.1
    %v838 = vmul.f32 %v526, 0.1
    %v839 = vmul.f32 %v529, 0.1
    %v840 = vmul.f32 %v534, 0.1
    %v841 = vmul.f32 %v537, 0.1
    %v842 = vmul.f32 %v542, 0.1
    %v843 = vmul.f32 %v545, 0.1
    %v844 = vmul.f32 %v550, 0.1
    %v845 = vmul.f32 %v553, 0.1
    %v846 = vmul.f32 %v558, 0.1
    %v847 = vmul.f32 %v561, 0.1
    %v848 = vmul.f32 %v566, 0.1
    %v849 = vmul.f32 %v569, 0.1
    %v850 = vmul.f32 %v574, 0.1
    %v851 = vmul.f32 %v577, 0.1
    %v852 = vmul.f32 %v582, 0.1
    %v853 = vmul.f32 %v585, 0.1
    %v854 = vmul.f32 %v590, 0.1
    %v855 = vmul.f32 %v593, 0.1
    %v856 = vmul.f32 %v598, 0.1
    %v857 = vmul.f32 %v601, 0.1
    %v858 = vmul.f32 %v606, 0.1
    %v859 = vmul.f32 %v609, 0.1
    %v860 = vmul.f32 %v614, 0.1
    %v861 = vmul.f32 %v617, 0.1
    %v862 = vmul.f32 %v622, 0.1
    %v863 = vmul.f32 %v625, 0.1
    %v864 = vmul.f32 %v630, 0.1
    %v865 = vmul.f32 %v633, 0.1
    %v866 = vmul.f32 %v638, 0.1
    %v867 = vmul.f32 %v641, 0.1
    %v868 = vmul.f32 %v646, 0.1
    %v869 = vmul.f32 %v649, 0.1
    %v870 = vmul.f32 %v654, 0.1
    %v871 = vmul.f32 %v657, 0.1
    %v872 = vmul.f32 %v662, 0.1
    %v873 = vmul.f32 %v665, 0.1
    %v874 = vmul.f32 %v670, 0.1
    %v875 = vmul.f32 %v673, 0.1
    %v876 = vmul.f32 %v678, 0.1
    %v877 = vmul.f32 %v681, 0.1
    %v878 = vmul.f32 %v686, 0.1
    %v879 = vmul.f32 %v689, 0.1
    %v880 = vmul.f32 %v694, 0.1
    %v881 = vmul.f32 %v697, 0.1
    %v882 = vmul.f32 %v702, 0.1
    %v883 = vmul.f32 %v705, 0.1
    %v884 = vmul.f32 %v710, 0.1
    %v885 = vmul.f32 %v713, 0.1
    %v886 = vmul.f32 %v718, 0.1
    %v887 = vmul.f32 %v721, 0.1
    %v888 = vmul.f32 %v726, 0.1
    %v889 = vmul.f32 %v729, 0.1
    %v890 = vmul.f32 %v734, 0.1
    %v891 = vmul.f32 %v737, 0.1
    %v892 = vmul.f32 %v742, 0.1
    %v893 = vmul.f32 %v745, 0.1
    %v894 = vmul.f32 %v750, 0.1
    %v895 = vmul.f32 %v753, 0.1
    %v896 = vmul.f32 %v758, 0.1
    %v897 = vmul.f32 %v761, 0.1
    %v898 = vmul.f32 %v766, 0.1
    %v899 = vmul.f32 %v769, 0.1
    %v900 = vsel %vm772, %v518, %v836
    %v901 = vsel %vm773, %v521, %v837
    %v902 = vsel %vm774, %v526, %v838
    %v903 = vsel %vm775, %v529, %v839
    %v904 = vsel %vm776, %v534, %v840
    %v905 = vsel %vm777, %v537, %v841
    %v906 = vsel %vm778, %v542, %v842
    %v907 = vsel %vm779, %v545, %v843
    %v908 = vsel %vm780, %v550, %v844
    %v909 = vsel %vm781, %v553, %v845
    %v910 = vsel %vm782, %v558, %v846
    %v911 = vsel %vm783, %v561, %v847
    %v912 = vsel %vm784, %v566, %v848
    %v913 = vsel %vm785, %v569, %v849
    %v914 = vsel %vm786, %v574, %v850
    %v915 = vsel %vm787, %v577, %v851
    %v916 = vsel %vm788, %v582, %v852
    %v917 = vsel %vm789, %v585, %v853
    %v918 = vsel %vm790, %v590, %v854
    %v919 = vsel %vm791, %v593, %v855
    %v920 = vsel %vm792, %v598, %v856
    %v921 = vsel %vm793, %v601, %v857
    %v922 = vsel %vm794, %v606, %v858
    %v923 = vsel %vm795, %v609, %v859
    %v924 = vsel %vm796, %v614, %v860
    %v925 = vsel %vm797, %v617, %v861
    %v926 = vsel %vm798, %v622, %v862
    %v927 = vsel %vm799, %v625, %v863
    %v928 = vsel %vm800, %v630, %v864
    %v929 = vsel %vm801, %v633, %v865
    %v930 = vsel %vm802, %v638, %v866
    %v931 = vsel %vm803, %v641, %v867
    %v932 = vsel %vm804, %v646, %v868
    %v933 = vsel %vm805, %v649, %v869
    %v934 = vsel %vm806, %v654, %v870
    %v935 = vsel %vm807, %v657, %v871
    %v936 = vsel %vm808, %v662, %v872
    %v937 = vsel %vm809, %v665, %v873
    %v938 = vsel %vm810, %v670, %v874
    %v939 = vsel %vm811, %v673, %v875
    %v940 = vsel %vm812, %v678, %v876
    %v941 = vsel %vm813, %v681, %v877
    %v942 = vsel %vm814, %v686, %v878
    %v943 = vsel %vm815, %v689, %v879
    %v944 = vsel %vm816, %v694, %v880
    %v945 = vsel %vm817, %v697, %v881
    %v946 = vsel %vm818, %v702, %v882
    %v947 = vsel %vm819, %v705, %v883
    %v948 = vsel %vm820, %v710, %v884
    %v949 = vsel %vm821, %v713, %v885
    %v950 = vsel %vm822, %v718, %v886
    %v951 = vsel %vm823, %v721, %v887
    %v952 = vsel %vm824, %v726, %v888
    %v953 = vsel %vm825, %v729, %v889
    %v954 = vsel %vm826, %v734, %v890
    %v955 = vsel %vm827, %v737, %v891
    %v956 = vsel %vm828, %v742, %v892
    %v957 = vsel %vm829, %v745, %v893
    %v958 = vsel %vm830, %v750, %v894
    %v959 = vsel %vm831, %v753, %v895
    %v960 = vsel %vm832, %v758, %v896
    %v961 = vsel %vm833, %v761, %v897
    %v962 = vsel %vm834, %v766, %v898
    %v963 = vsel %vm835, %v769, %v899
    %v964 = vpack.c.bf16 %v901, %v900
    %v965 = vpack.c.bf16 %v903, %v902
    %v966 = vpack.c.bf16 %v905, %v904
    %v967 = vpack.c.bf16 %v907, %v906
    %v968 = vpack.c.bf16 %v909, %v908
    %v969 = vpack.c.bf16 %v911, %v910
    %v970 = vpack.c.bf16 %v913, %v912
    %v971 = vpack.c.bf16 %v915, %v914
    %v972 = vpack.c.bf16 %v917, %v916
    %v973 = vpack.c.bf16 %v919, %v918
    %v974 = vpack.c.bf16 %v921, %v920
    %v975 = vpack.c.bf16 %v923, %v922
    %v976 = vpack.c.bf16 %v925, %v924
    %v977 = vpack.c.bf16 %v927, %v926
    %v978 = vpack.c.bf16 %v929, %v928
    %v979 = vpack.c.bf16 %v931, %v930
    %v980 = vpack.c.bf16 %v933, %v932
    %v981 = vpack.c.bf16 %v935, %v934
    %v982 = vpack.c.bf16 %v937, %v936
    %v983 = vpack.c.bf16 %v939, %v938
    %v984 = vpack.c.bf16 %v941, %v940
    %v985 = vpack.c.bf16 %v943, %v942
    %v986 = vpack.c.bf16 %v945, %v944
    %v987 = vpack.c.bf16 %v947, %v946
    %v988 = vpack.c.bf16 %v949, %v948
    %v989 = vpack.c.bf16 %v951, %v950
    %v990 = vpack.c.bf16 %v953, %v952
    %v991 = vpack.c.bf16 %v955, %v954
    %v992 = vpack.c.bf16 %v957, %v956
    %v993 = vpack.c.bf16 %v959, %v958
    %v994 = vpack.c.bf16 %v961, %v960
    %v995 = vpack.c.bf16 %v963, %v962
    %v996 = vld [vmem:[%s5] sm:$0xf]
    %v997 = vld [vmem:[%s5 + $0x4] sm:$0xf]
    %v998 = vld [vmem:[%s5 + $0x8] sm:$0xf]
    %v999 = vld [vmem:[%s5 + $0xc] sm:$0xf]
    %v1000 = vld [vmem:[%s6] sm:$0x1]
    %v1002 = vlaneseq
    %v1003 = vshrl.u32 %v1002, 7
    %v1004 = vsub.s32 0, %v1003
    %v1005 = vrot.slane %v1000, %v1004
    %v1011 = vunpack.c.l.b16 %v996
    %v1012 = vunpack.c.l.b16 %v997
    %v1013 = vunpack.c.l.b16 %v998
    %v1014 = vunpack.c.l.b16 %v999
    %v1015 = vpack.c.b16 %v1012, %v1011
    %v1016 = vpack.c.b16 %v1014, %v1013
    %v1020 = vsel %vm274, %v964, 0
    %v1023 = vsel %vm274, %v965, 0
    %v1026 = vsel %vm274, %v966, 0
    %v1029 = vsel %vm274, %v967, 0
    %v1032 = vsel %vm274, %v968, 0
    %v1035 = vsel %vm274, %v969, 0
    %v1038 = vsel %vm274, %v970, 0
    %v1041 = vsel %vm274, %v971, 0
    %v1044 = vsel %vm274, %v972, 0
    %v1047 = vsel %vm274, %v973, 0
    %v1050 = vsel %vm274, %v974, 0
    %v1053 = vsel %vm274, %v975, 0
    %v1056 = vsel %vm274, %v976, 0
    %v1059 = vsel %vm274, %v977, 0
    %v1062 = vsel %vm274, %v978, 0
    %v1065 = vsel %vm274, %v979, 0
    %v1068 = vsel %vm274, %v980, 0
    %v1071 = vsel %vm274, %v981, 0
    %v1074 = vsel %vm274, %v982, 0
    %v1077 = vsel %vm274, %v983, 0
    %v1080 = vsel %vm274, %v984, 0
    %v1083 = vsel %vm274, %v985, 0
    %v1086 = vsel %vm274, %v986, 0
    %v1089 = vsel %vm274, %v987, 0
    %v1092 = vsel %vm274, %v988, 0
    %v1095 = vsel %vm274, %v989, 0
    %v1098 = vsel %vm274, %v990, 0
    %v1101 = vsel %vm274, %v991, 0
    %v1104 = vsel %vm274, %v992, 0
    %v1107 = vsel %vm274, %v993, 0
    %v1110 = vsel %vm274, %v994, 0
    %v1113 = vsel %vm274, %v995, 0
    %1115 = vmatprep.subr.bf16.mxu0 0
    %1116 = vmatpush1.bf16.msra.mxu0 0
    %1117 = vmatprep.subr.bf16.mxu0 0
    %1118 = vmatpush1.bf16.msra.mxu0 0
    %1119 = vmatprep.subr.bf16.mxu0 0
    %1120 = vmatpush1.bf16.msra.mxu0 0
    %1121 = vmatprep.subr.bf16.mxu0 0
    %1122 = vmatpush1.bf16.msra.mxu0 0
    %1123 = vmatprep.subr.bf16.mxu0 0
    %1124 = vmatpush1.bf16.msra.mxu0 0
    %1125 = vmatprep.subr.bf16.mxu0 0
    %1126 = vmatpush1.bf16.msra.mxu0 0
    %1127 = vmatprep.subr.bf16.mxu0 0
    %1128 = vmatpush1.bf16.msra.mxu0 %v1016
    %1129 = vmatprep.subr.bf16.mxu0 0
    %1130 = vmatpush1.bf16.msra.mxu0 %v1015
    %1131 = vmatprep.subr.bf16.mxu0 0
    %1132 = vmatpush2.bf16.msra.mxu0 0
    %1133 = vmatprep.subr.bf16.mxu0 0
    %1134 = vmatpush2.bf16.msra.mxu0 0
    %1135 = vmatprep.subr.bf16.mxu0 0
    %1136 = vmatpush2.bf16.msra.mxu0 0
    %1137 = vmatprep.subr.bf16.mxu0 0
    %1138 = vmatpush2.bf16.msra.mxu0 0
    %1139 = vmatprep.subr.bf16.mxu0 0
    %1140 = vmatpush2.bf16.msra.mxu0 0
    %1141 = vmatprep.subr.bf16.mxu0 0
    %1142 = vmatpush2.bf16.msra.mxu0 0
    %1143 = vmatprep.subr.bf16.mxu0 0
    %1144 = vmatpush2.bf16.msra.mxu0 0
    %1145 = vmatprep.subr.bf16.mxu0 0
    %1146 = vmatpush2.bf16.msra.mxu0 0
    %1147 = vmatprep.mubr.bf16.mxu0 0
    %1148 = vmatmul.mubr.bf16.gmra.mxu0 %v1020
    %v1149 = vpop.f32.mrf.mxu0
    %v1150 = vadd.f32 %v1005, %v1149
    %v1151 = vpop.f32.mrf.mxu0
    %v1152 = vpop.f32.mrf.mxu0
    %v1153 = vadd.f32 %v1005, %v1152
    %v1154 = vpop.f32.mrf.mxu0
    %1155 = vmatprep.mubr.bf16.mxu0 0
    %1156 = vmatmul.mubr.bf16.gmra.mxu0 %v1023
    %v1157 = vpop.f32.mrf.mxu0
    %v1158 = vadd.f32 %v1005, %v1157
    %v1159 = vpop.f32.mrf.mxu0
    %v1160 = vpop.f32.mrf.mxu0
    %v1161 = vadd.f32 %v1005, %v1160
    %v1162 = vpop.f32.mrf.mxu0
    %1163 = vmatprep.mubr.bf16.mxu0 0
    %1164 = vmatmul.mubr.bf16.gmra.mxu0 %v1026
    %v1165 = vpop.f32.mrf.mxu0
    %v1166 = vadd.f32 %v1005, %v1165
    %v1167 = vpop.f32.mrf.mxu0
    %v1168 = vpop.f32.mrf.mxu0
    %v1169 = vadd.f32 %v1005, %v1168
    %v1170 = vpop.f32.mrf.mxu0
    %1171 = vmatprep.mubr.bf16.mxu0 0
    %1172 = vmatmul.mubr.bf16.gmra.mxu0 %v1029
    %v1173 = vpop.f32.mrf.mxu0
    %v1174 = vadd.f32 %v1005, %v1173
    %v1175 = vpop.f32.mrf.mxu0
    %v1176 = vpop.f32.mrf.mxu0
    %v1177 = vadd.f32 %v1005, %v1176
    %v1178 = vpop.f32.mrf.mxu0
    %1179 = vmatprep.mubr.bf16.mxu0 0
    %1180 = vmatmul.mubr.bf16.gmra.mxu0 %v1032
    %v1181 = vpop.f32.mrf.mxu0
    %v1182 = vadd.f32 %v1005, %v1181
    %v1183 = vpop.f32.mrf.mxu0
    %v1184 = vpop.f32.mrf.mxu0
    %v1185 = vadd.f32 %v1005, %v1184
    %v1186 = vpop.f32.mrf.mxu0
    %1187 = vmatprep.mubr.bf16.mxu0 0
    %1188 = vmatmul.mubr.bf16.gmra.mxu0 %v1035
    %v1189 = vpop.f32.mrf.mxu0
    %v1190 = vadd.f32 %v1005, %v1189
    %v1191 = vpop.f32.mrf.mxu0
    %v1192 = vpop.f32.mrf.mxu0
    %v1193 = vadd.f32 %v1005, %v1192
    %v1194 = vpop.f32.mrf.mxu0
    %1195 = vmatprep.mubr.bf16.mxu0 0
    %1196 = vmatmul.mubr.bf16.gmra.mxu0 %v1038
    %v1197 = vpop.f32.mrf.mxu0
    %v1198 = vadd.f32 %v1005, %v1197
    %v1199 = vpop.f32.mrf.mxu0
    %v1200 = vpop.f32.mrf.mxu0
    %v1201 = vadd.f32 %v1005, %v1200
    %v1202 = vpop.f32.mrf.mxu0
    %1203 = vmatprep.mubr.bf16.mxu0 0
    %1204 = vmatmul.mubr.bf16.gmra.mxu0 %v1041
    %v1205 = vpop.f32.mrf.mxu0
    %v1206 = vadd.f32 %v1005, %v1205
    %v1207 = vpop.f32.mrf.mxu0
    %v1208 = vpop.f32.mrf.mxu0
    %v1209 = vadd.f32 %v1005, %v1208
    %v1210 = vpop.f32.mrf.mxu0
    %1211 = vmatprep.mubr.bf16.mxu0 0
    %1212 = vmatmul.mubr.bf16.gmra.mxu0 %v1044
    %v1213 = vpop.f32.mrf.mxu0
    %v1214 = vadd.f32 %v1005, %v1213
    %v1215 = vpop.f32.mrf.mxu0
    %v1216 = vpop.f32.mrf.mxu0
    %v1217 = vadd.f32 %v1005, %v1216
    %v1218 = vpop.f32.mrf.mxu0
    %1219 = vmatprep.mubr.bf16.mxu0 0
    %1220 = vmatmul.mubr.bf16.gmra.mxu0 %v1047
    %v1221 = vpop.f32.mrf.mxu0
    %v1222 = vadd.f32 %v1005, %v1221
    %v1223 = vpop.f32.mrf.mxu0
    %v1224 = vpop.f32.mrf.mxu0
    %v1225 = vadd.f32 %v1005, %v1224
    %v1226 = vpop.f32.mrf.mxu0
    %1227 = vmatprep.mubr.bf16.mxu0 0
    %1228 = vmatmul.mubr.bf16.gmra.mxu0 %v1050
    %v1229 = vpop.f32.mrf.mxu0
    %v1230 = vadd.f32 %v1005, %v1229
    %v1231 = vpop.f32.mrf.mxu0
    %v1232 = vpop.f32.mrf.mxu0
    %v1233 = vadd.f32 %v1005, %v1232
    %v1234 = vpop.f32.mrf.mxu0
    %1235 = vmatprep.mubr.bf16.mxu0 0
    %1236 = vmatmul.mubr.bf16.gmra.mxu0 %v1053
    %v1237 = vpop.f32.mrf.mxu0
    %v1238 = vadd.f32 %v1005, %v1237
    %v1239 = vpop.f32.mrf.mxu0
    %v1240 = vpop.f32.mrf.mxu0
    %v1241 = vadd.f32 %v1005, %v1240
    %v1242 = vpop.f32.mrf.mxu0
    %1243 = vmatprep.mubr.bf16.mxu0 0
    %1244 = vmatmul.mubr.bf16.gmra.mxu0 %v1056
    %v1245 = vpop.f32.mrf.mxu0
    %v1246 = vadd.f32 %v1005, %v1245
    %v1247 = vpop.f32.mrf.mxu0
    %v1248 = vpop.f32.mrf.mxu0
    %v1249 = vadd.f32 %v1005, %v1248
    %v1250 = vpop.f32.mrf.mxu0
    %1251 = vmatprep.mubr.bf16.mxu0 0
    %1252 = vmatmul.mubr.bf16.gmra.mxu0 %v1059
    %v1253 = vpop.f32.mrf.mxu0
    %v1254 = vadd.f32 %v1005, %v1253
    %v1255 = vpop.f32.mrf.mxu0
    %v1256 = vpop.f32.mrf.mxu0
    %v1257 = vadd.f32 %v1005, %v1256
    %v1258 = vpop.f32.mrf.mxu0
    %1259 = vmatprep.mubr.bf16.mxu0 0
    %1260 = vmatmul.mubr.bf16.gmra.mxu0 %v1062
    %v1261 = vpop.f32.mrf.mxu0
    %v1262 = vadd.f32 %v1005, %v1261
    %v1263 = vpop.f32.mrf.mxu0
    %v1264 = vpop.f32.mrf.mxu0
    %v1265 = vadd.f32 %v1005, %v1264
    %v1266 = vpop.f32.mrf.mxu0
    %1267 = vmatprep.mubr.bf16.mxu0 0
    %1268 = vmatmul.mubr.bf16.gmra.mxu0 %v1065
    %v1269 = vpop.f32.mrf.mxu0
    %v1270 = vadd.f32 %v1005, %v1269
    %v1271 = vpop.f32.mrf.mxu0
    %v1272 = vpop.f32.mrf.mxu0
    %v1273 = vadd.f32 %v1005, %v1272
    %v1274 = vpop.f32.mrf.mxu0
    %1275 = vmatprep.mubr.bf16.mxu0 0
    %1276 = vmatmul.mubr.bf16.gmra.mxu0 %v1068
    %v1277 = vpop.f32.mrf.mxu0
    %v1278 = vadd.f32 %v1005, %v1277
    %v1279 = vpop.f32.mrf.mxu0
    %v1280 = vpop.f32.mrf.mxu0
    %v1281 = vadd.f32 %v1005, %v1280
    %v1282 = vpop.f32.mrf.mxu0
    %1283 = vmatprep.mubr.bf16.mxu0 0
    %1284 = vmatmul.mubr.bf16.gmra.mxu0 %v1071
    %v1285 = vpop.f32.mrf.mxu0
    %v1286 = vadd.f32 %v1005, %v1285
    %v1287 = vpop.f32.mrf.mxu0
    %v1288 = vpop.f32.mrf.mxu0
    %v1289 = vadd.f32 %v1005, %v1288
    %v1290 = vpop.f32.mrf.mxu0
    %1291 = vmatprep.mubr.bf16.mxu0 0
    %1292 = vmatmul.mubr.bf16.gmra.mxu0 %v1074
    %v1293 = vpop.f32.mrf.mxu0
    %v1294 = vadd.f32 %v1005, %v1293
    %v1295 = vpop.f32.mrf.mxu0
    %v1296 = vpop.f32.mrf.mxu0
    %v1297 = vadd.f32 %v1005, %v1296
    %v1298 = vpop.f32.mrf.mxu0
    %1299 = vmatprep.mubr.bf16.mxu0 0
    %1300 = vmatmul.mubr.bf16.gmra.mxu0 %v1077
    %v1301 = vpop.f32.mrf.mxu0
    %v1302 = vadd.f32 %v1005, %v1301
    %v1303 = vpop.f32.mrf.mxu0
    %v1304 = vpop.f32.mrf.mxu0
    %v1305 = vadd.f32 %v1005, %v1304
    %v1306 = vpop.f32.mrf.mxu0
    %1307 = vmatprep.mubr.bf16.mxu0 0
    %1308 = vmatmul.mubr.bf16.gmra.mxu0 %v1080
    %v1309 = vpop.f32.mrf.mxu0
    %v1310 = vadd.f32 %v1005, %v1309
    %v1311 = vpop.f32.mrf.mxu0
    %v1312 = vpop.f32.mrf.mxu0
    %v1313 = vadd.f32 %v1005, %v1312
    %v1314 = vpop.f32.mrf.mxu0
    %1315 = vmatprep.mubr.bf16.mxu0 0
    %1316 = vmatmul.mubr.bf16.gmra.mxu0 %v1083
    %v1317 = vpop.f32.mrf.mxu0
    %v1318 = vadd.f32 %v1005, %v1317
    %v1319 = vpop.f32.mrf.mxu0
    %v1320 = vpop.f32.mrf.mxu0
    %v1321 = vadd.f32 %v1005, %v1320
    %v1322 = vpop.f32.mrf.mxu0
    %1323 = vmatprep.mubr.bf16.mxu0 0
    %1324 = vmatmul.mubr.bf16.gmra.mxu0 %v1086
    %v1325 = vpop.f32.mrf.mxu0
    %v1326 = vadd.f32 %v1005, %v1325
    %v1327 = vpop.f32.mrf.mxu0
    %v1328 = vpop.f32.mrf.mxu0
    %v1329 = vadd.f32 %v1005, %v1328
    %v1330 = vpop.f32.mrf.mxu0
    %1331 = vmatprep.mubr.bf16.mxu0 0
    %1332 = vmatmul.mubr.bf16.gmra.mxu0 %v1089
    %v1333 = vpop.f32.mrf.mxu0
    %v1334 = vadd.f32 %v1005, %v1333
    %v1335 = vpop.f32.mrf.mxu0
    %v1336 = vpop.f32.mrf.mxu0
    %v1337 = vadd.f32 %v1005, %v1336
    %v1338 = vpop.f32.mrf.mxu0
    %1339 = vmatprep.mubr.bf16.mxu0 0
    %1340 = vmatmul.mubr.bf16.gmra.mxu0 %v1092
    %v1341 = vpop.f32.mrf.mxu0
    %v1342 = vadd.f32 %v1005, %v1341
    %v1343 = vpop.f32.mrf.mxu0
    %v1344 = vpop.f32.mrf.mxu0
    %v1345 = vadd.f32 %v1005, %v1344
    %v1346 = vpop.f32.mrf.mxu0
    %1347 = vmatprep.mubr.bf16.mxu0 0
    %1348 = vmatmul.mubr.bf16.gmra.mxu0 %v1095
    %v1349 = vpop.f32.mrf.mxu0
    %v1350 = vadd.f32 %v1005, %v1349
    %v1351 = vpop.f32.mrf.mxu0
    %v1352 = vpop.f32.mrf.mxu0
    %v1353 = vadd.f32 %v1005, %v1352
    %v1354 = vpop.f32.mrf.mxu0
    %1355 = vmatprep.mubr.bf16.mxu0 0
    %1356 = vmatmul.mubr.bf16.gmra.mxu0 %v1098
    %v1357 = vpop.f32.mrf.mxu0
    %v1358 = vadd.f32 %v1005, %v1357
    %v1359 = vpop.f32.mrf.mxu0
    %v1360 = vpop.f32.mrf.mxu0
    %v1361 = vadd.f32 %v1005, %v1360
    %v1362 = vpop.f32.mrf.mxu0
    %1363 = vmatprep.mubr.bf16.mxu0 0
    %1364 = vmatmul.mubr.bf16.gmra.mxu0 %v1101
    %v1365 = vpop.f32.mrf.mxu0
    %v1366 = vadd.f32 %v1005, %v1365
    %v1367 = vpop.f32.mrf.mxu0
    %v1368 = vpop.f32.mrf.mxu0
    %v1369 = vadd.f32 %v1005, %v1368
    %v1370 = vpop.f32.mrf.mxu0
    %1371 = vmatprep.mubr.bf16.mxu0 0
    %1372 = vmatmul.mubr.bf16.gmra.mxu0 %v1104
    %v1373 = vpop.f32.mrf.mxu0
    %v1374 = vadd.f32 %v1005, %v1373
    %v1375 = vpop.f32.mrf.mxu0
    %v1376 = vpop.f32.mrf.mxu0
    %v1377 = vadd.f32 %v1005, %v1376
    %v1378 = vpop.f32.mrf.mxu0
    %1379 = vmatprep.mubr.bf16.mxu0 0
    %1380 = vmatmul.mubr.bf16.gmra.mxu0 %v1107
    %v1381 = vpop.f32.mrf.mxu0
    %v1382 = vadd.f32 %v1005, %v1381
    %v1383 = vpop.f32.mrf.mxu0
    %v1384 = vpop.f32.mrf.mxu0
    %v1385 = vadd.f32 %v1005, %v1384
    %v1386 = vpop.f32.mrf.mxu0
    %1387 = vmatprep.mubr.bf16.mxu0 0
    %1388 = vmatmul.mubr.bf16.gmra.mxu0 %v1110
    %v1389 = vpop.f32.mrf.mxu0
    %v1390 = vadd.f32 %v1005, %v1389
    %v1391 = vpop.f32.mrf.mxu0
    %v1392 = vpop.f32.mrf.mxu0
    %v1393 = vadd.f32 %v1005, %v1392
    %v1394 = vpop.f32.mrf.mxu0
    %1395 = vmatprep.mubr.bf16.mxu0 0
    %1396 = vmatmul.mubr.bf16.gmra.mxu0 %v1113
    %v1397 = vpop.f32.mrf.mxu0
    %v1398 = vadd.f32 %v1005, %v1397
    %v1399 = vpop.f32.mrf.mxu0
    %v1400 = vpop.f32.mrf.mxu0
    %v1401 = vadd.f32 %v1005, %v1400
    %v1402 = vpop.f32.mrf.mxu0
    %1403 = vdwg.mxu0
    %vm1404 = vcmp.ge.f32.partialorder %v1150, 0.0
    %vm1405 = vcmp.ge.f32.partialorder %v1153, 0.0
    %vm1406 = vcmp.ge.f32.partialorder %v1158, 0.0
    %vm1407 = vcmp.ge.f32.partialorder %v1161, 0.0
    %vm1408 = vcmp.ge.f32.partialorder %v1166, 0.0
    %vm1409 = vcmp.ge.f32.partialorder %v1169, 0.0
    %vm1410 = vcmp.ge.f32.partialorder %v1174, 0.0
    %vm1411 = vcmp.ge.f32.partialorder %v1177, 0.0
    %vm1412 = vcmp.ge.f32.partialorder %v1182, 0.0
    %vm1413 = vcmp.ge.f32.partialorder %v1185, 0.0
    %vm1414 = vcmp.ge.f32.partialorder %v1190, 0.0
    %vm1415 = vcmp.ge.f32.partialorder %v1193, 0.0
    %vm1416 = vcmp.ge.f32.partialorder %v1198, 0.0
    %vm1417 = vcmp.ge.f32.partialorder %v1201, 0.0
    %vm1418 = vcmp.ge.f32.partialorder %v1206, 0.0
    %vm1419 = vcmp.ge.f32.partialorder %v1209, 0.0
    %vm1420 = vcmp.ge.f32.partialorder %v1214, 0.0
    %vm1421 = vcmp.ge.f32.partialorder %v1217, 0.0
    %vm1422 = vcmp.ge.f32.partialorder %v1222, 0.0
    %vm1423 = vcmp.ge.f32.partialorder %v1225, 0.0
    %vm1424 = vcmp.ge.f32.partialorder %v1230, 0.0
    %vm1425 = vcmp.ge.f32.partialorder %v1233, 0.0
    %vm1426 = vcmp.ge.f32.partialorder %v1238, 0.0
    %vm1427 = vcmp.ge.f32.partialorder %v1241, 0.0
    %vm1428 = vcmp.ge.f32.partialorder %v1246, 0.0
    %vm1429 = vcmp.ge.f32.partialorder %v1249, 0.0
    %vm1430 = vcmp.ge.f32.partialorder %v1254, 0.0
    %vm1431 = vcmp.ge.f32.partialorder %v1257, 0.0
    %vm1432 = vcmp.ge.f32.partialorder %v1262, 0.0
    %vm1433 = vcmp.ge.f32.partialorder %v1265, 0.0
    %vm1434 = vcmp.ge.f32.partialorder %v1270, 0.0
    %vm1435 = vcmp.ge.f32.partialorder %v1273, 0.0
    %vm1436 = vcmp.ge.f32.partialorder %v1278, 0.0
    %vm1437 = vcmp.ge.f32.partialorder %v1281, 0.0
    %vm1438 = vcmp.ge.f32.partialorder %v1286, 0.0
    %vm1439 = vcmp.ge.f32.partialorder %v1289, 0.0
    %vm1440 = vcmp.ge.f32.partialorder %v1294, 0.0
    %vm1441 = vcmp.ge.f32.partialorder %v1297, 0.0
    %vm1442 = vcmp.ge.f32.partialorder %v1302, 0.0
    %vm1443 = vcmp.ge.f32.partialorder %v1305, 0.0
    %vm1444 = vcmp.ge.f32.partialorder %v1310, 0.0
    %vm1445 = vcmp.ge.f32.partialorder %v1313, 0.0
    %vm1446 = vcmp.ge.f32.partialorder %v1318, 0.0
    %vm1447 = vcmp.ge.f32.partialorder %v1321, 0.0
    %vm1448 = vcmp.ge.f32.partialorder %v1326, 0.0
    %vm1449 = vcmp.ge.f32.partialorder %v1329, 0.0
    %vm1450 = vcmp.ge.f32.partialorder %v1334, 0.0
    %vm1451 = vcmp.ge.f32.partialorder %v1337, 0.0
    %vm1452 = vcmp.ge.f32.partialorder %v1342, 0.0
    %vm1453 = vcmp.ge.f32.partialorder %v1345, 0.0
    %vm1454 = vcmp.ge.f32.partialorder %v1350, 0.0
    %vm1455 = vcmp.ge.f32.partialorder %v1353, 0.0
    %vm1456 = vcmp.ge.f32.partialorder %v1358, 0.0
    %vm1457 = vcmp.ge.f32.partialorder %v1361, 0.0
    %vm1458 = vcmp.ge.f32.partialorder %v1366, 0.0
    %vm1459 = vcmp.ge.f32.partialorder %v1369, 0.0
    %vm1460 = vcmp.ge.f32.partialorder %v1374, 0.0
    %vm1461 = vcmp.ge.f32.partialorder %v1377, 0.0
    %vm1462 = vcmp.ge.f32.partialorder %v1382, 0.0
    %vm1463 = vcmp.ge.f32.partialorder %v1385, 0.0
    %vm1464 = vcmp.ge.f32.partialorder %v1390, 0.0
    %vm1465 = vcmp.ge.f32.partialorder %v1393, 0.0
    %vm1466 = vcmp.ge.f32.partialorder %v1398, 0.0
    %vm1467 = vcmp.ge.f32.partialorder %v1401, 0.0
    %v1468 = vmul.f32 %v1150, 0.1
    %v1469 = vmul.f32 %v1153, 0.1
    %v1470 = vmul.f32 %v1158, 0.1
    %v1471 = vmul.f32 %v1161, 0.1
    %v1472 = vmul.f32 %v1166, 0.1
    %v1473 = vmul.f32 %v1169, 0.1
    %v1474 = vmul.f32 %v1174, 0.1
    %v1475 = vmul.f32 %v1177, 0.1
    %v1476 = vmul.f32 %v1182, 0.1
    %v1477 = vmul.f32 %v1185, 0.1
    %v1478 = vmul.f32 %v1190, 0.1
    %v1479 = vmul.f32 %v1193, 0.1
    %v1480 = vmul.f32 %v1198, 0.1
    %v1481 = vmul.f32 %v1201, 0.1
    %v1482 = vmul.f32 %v1206, 0.1
    %v1483 = vmul.f32 %v1209, 0.1
    %v1484 = vmul.f32 %v1214, 0.1
    %v1485 = vmul.f32 %v1217, 0.1
    %v1486 = vmul.f32 %v1222, 0.1
    %v1487 = vmul.f32 %v1225, 0.1
    %v1488 = vmul.f32 %v1230, 0.1
    %v1489 = vmul.f32 %v1233, 0.1
    %v1490 = vmul.f32 %v1238, 0.1
    %v1491 = vmul.f32 %v1241, 0.1
    %v1492 = vmul.f32 %v1246, 0.1
    %v1493 = vmul.f32 %v1249, 0.1
    %v1494 = vmul.f32 %v1254, 0.1
    %v1495 = vmul.f32 %v1257, 0.1
    %v1496 = vmul.f32 %v1262, 0.1
    %v1497 = vmul.f32 %v1265, 0.1
    %v1498 = vmul.f32 %v1270, 0.1
    %v1499 = vmul.f32 %v1273, 0.1
    %v1500 = vmul.f32 %v1278, 0.1
    %v1501 = vmul.f32 %v1281, 0.1
    %v1502 = vmul.f32 %v1286, 0.1
    %v1503 = vmul.f32 %v1289, 0.1
    %v1504 = vmul.f32 %v1294, 0.1
    %v1505 = vmul.f32 %v1297, 0.1
    %v1506 = vmul.f32 %v1302, 0.1
    %v1507 = vmul.f32 %v1305, 0.1
    %v1508 = vmul.f32 %v1310, 0.1
    %v1509 = vmul.f32 %v1313, 0.1
    %v1510 = vmul.f32 %v1318, 0.1
    %v1511 = vmul.f32 %v1321, 0.1
    %v1512 = vmul.f32 %v1326, 0.1
    %v1513 = vmul.f32 %v1329, 0.1
    %v1514 = vmul.f32 %v1334, 0.1
    %v1515 = vmul.f32 %v1337, 0.1
    %v1516 = vmul.f32 %v1342, 0.1
    %v1517 = vmul.f32 %v1345, 0.1
    %v1518 = vmul.f32 %v1350, 0.1
    %v1519 = vmul.f32 %v1353, 0.1
    %v1520 = vmul.f32 %v1358, 0.1
    %v1521 = vmul.f32 %v1361, 0.1
    %v1522 = vmul.f32 %v1366, 0.1
    %v1523 = vmul.f32 %v1369, 0.1
    %v1524 = vmul.f32 %v1374, 0.1
    %v1525 = vmul.f32 %v1377, 0.1
    %v1526 = vmul.f32 %v1382, 0.1
    %v1527 = vmul.f32 %v1385, 0.1
    %v1528 = vmul.f32 %v1390, 0.1
    %v1529 = vmul.f32 %v1393, 0.1
    %v1530 = vmul.f32 %v1398, 0.1
    %v1531 = vmul.f32 %v1401, 0.1
    %v1532 = vsel %vm1404, %v1150, %v1468
    %v1533 = vsel %vm1405, %v1153, %v1469
    %v1534 = vsel %vm1406, %v1158, %v1470
    %v1535 = vsel %vm1407, %v1161, %v1471
    %v1536 = vsel %vm1408, %v1166, %v1472
    %v1537 = vsel %vm1409, %v1169, %v1473
    %v1538 = vsel %vm1410, %v1174, %v1474
    %v1539 = vsel %vm1411, %v1177, %v1475
    %v1540 = vsel %vm1412, %v1182, %v1476
    %v1541 = vsel %vm1413, %v1185, %v1477
    %v1542 = vsel %vm1414, %v1190, %v1478
    %v1543 = vsel %vm1415, %v1193, %v1479
    %v1544 = vsel %vm1416, %v1198, %v1480
    %v1545 = vsel %vm1417, %v1201, %v1481
    %v1546 = vsel %vm1418, %v1206, %v1482
    %v1547 = vsel %vm1419, %v1209, %v1483
    %v1548 = vsel %vm1420, %v1214, %v1484
    %v1549 = vsel %vm1421, %v1217, %v1485
    %v1550 = vsel %vm1422, %v1222, %v1486
    %v1551 = vsel %vm1423, %v1225, %v1487
    %v1552 = vsel %vm1424, %v1230, %v1488
    %v1553 = vsel %vm1425, %v1233, %v1489
    %v1554 = vsel %vm1426, %v1238, %v1490
    %v1555 = vsel %vm1427, %v1241, %v1491
    %v1556 = vsel %vm1428, %v1246, %v1492
    %v1557 = vsel %vm1429, %v1249, %v1493
    %v1558 = vsel %vm1430, %v1254, %v1494
    %v1559 = vsel %vm1431, %v1257, %v1495
    %v1560 = vsel %vm1432, %v1262, %v1496
    %v1561 = vsel %vm1433, %v1265, %v1497
    %v1562 = vsel %vm1434, %v1270, %v1498
    %v1563 = vsel %vm1435, %v1273, %v1499
    %v1564 = vsel %vm1436, %v1278, %v1500
    %v1565 = vsel %vm1437, %v1281, %v1501
    %v1566 = vsel %vm1438, %v1286, %v1502
    %v1567 = vsel %vm1439, %v1289, %v1503
    %v1568 = vsel %vm1440, %v1294, %v1504
    %v1569 = vsel %vm1441, %v1297, %v1505
    %v1570 = vsel %vm1442, %v1302, %v1506
    %v1571 = vsel %vm1443, %v1305, %v1507
    %v1572 = vsel %vm1444, %v1310, %v1508
    %v1573 = vsel %vm1445, %v1313, %v1509
    %v1574 = vsel %vm1446, %v1318, %v1510
    %v1575 = vsel %vm1447, %v1321, %v1511
    %v1576 = vsel %vm1448, %v1326, %v1512
    %v1577 = vsel %vm1449, %v1329, %v1513
    %v1578 = vsel %vm1450, %v1334, %v1514
    %v1579 = vsel %vm1451, %v1337, %v1515
    %v1580 = vsel %vm1452, %v1342, %v1516
    %v1581 = vsel %vm1453, %v1345, %v1517
    %v1582 = vsel %vm1454, %v1350, %v1518
    %v1583 = vsel %vm1455, %v1353, %v1519
    %v1584 = vsel %vm1456, %v1358, %v1520
    %v1585 = vsel %vm1457, %v1361, %v1521
    %v1586 = vsel %vm1458, %v1366, %v1522
    %v1587 = vsel %vm1459, %v1369, %v1523
    %v1588 = vsel %vm1460, %v1374, %v1524
    %v1589 = vsel %vm1461, %v1377, %v1525
    %v1590 = vsel %vm1462, %v1382, %v1526
    %v1591 = vsel %vm1463, %v1385, %v1527
    %v1592 = vsel %vm1464, %v1390, %v1528
    %v1593 = vsel %vm1465, %v1393, %v1529
    %v1594 = vsel %vm1466, %v1398, %v1530
    %v1595 = vsel %vm1467, %v1401, %v1531
    %v1596 = vpack.c.bf16 %v1533, %v1532
    %v1597 = vpack.c.bf16 %v1535, %v1534
    %v1598 = vpack.c.bf16 %v1537, %v1536
    %v1599 = vpack.c.bf16 %v1539, %v1538
    %v1600 = vpack.c.bf16 %v1541, %v1540
    %v1601 = vpack.c.bf16 %v1543, %v1542
    %v1602 = vpack.c.bf16 %v1545, %v1544
    %v1603 = vpack.c.bf16 %v1547, %v1546
    %v1604 = vpack.c.bf16 %v1549, %v1548
    %v1605 = vpack.c.bf16 %v1551, %v1550
    %v1606 = vpack.c.bf16 %v1553, %v1552
    %v1607 = vpack.c.bf16 %v1555, %v1554
    %v1608 = vpack.c.bf16 %v1557, %v1556
    %v1609 = vpack.c.bf16 %v1559, %v1558
    %v1610 = vpack.c.bf16 %v1561, %v1560
    %v1611 = vpack.c.bf16 %v1563, %v1562
    %v1612 = vpack.c.bf16 %v1565, %v1564
    %v1613 = vpack.c.bf16 %v1567, %v1566
    %v1614 = vpack.c.bf16 %v1569, %v1568
    %v1615 = vpack.c.bf16 %v1571, %v1570
    %v1616 = vpack.c.bf16 %v1573, %v1572
    %v1617 = vpack.c.bf16 %v1575, %v1574
    %v1618 = vpack.c.bf16 %v1577, %v1576
    %v1619 = vpack.c.bf16 %v1579, %v1578
    %v1620 = vpack.c.bf16 %v1581, %v1580
    %v1621 = vpack.c.bf16 %v1583, %v1582
    %v1622 = vpack.c.bf16 %v1585, %v1584
    %v1623 = vpack.c.bf16 %v1587, %v1586
    %v1624 = vpack.c.bf16 %v1589, %v1588
    %v1625 = vpack.c.bf16 %v1591, %v1590
    %v1626 = vpack.c.bf16 %v1593, %v1592
    %v1627 = vpack.c.bf16 %v1595, %v1594
    %v1628 = vld [vmem:[%s7] sm:$0xf]
    %v1629 = vld [vmem:[%s7 + $0x4] sm:$0xf]
    %v1630 = vld [vmem:[%s7 + $0x8] sm:$0xf]
    %v1631 = vld [vmem:[%s7 + $0xc] sm:$0xf]
    %v1632 = vld [vmem:[%s7 + $0x10] sm:$0xf]
    %v1633 = vld [vmem:[%s7 + $0x14] sm:$0xf]
    %v1634 = vld [vmem:[%s7 + $0x18] sm:$0xf]
    %v1635 = vld [vmem:[%s7 + $0x1c] sm:$0xf]
    %v1636 = vld [vmem:[%s8] sm:$0x1]
    %v1638 = vlaneseq
    %v1639 = vshrl.u32 %v1638, 7
    %v1640 = vsub.s32 0, %v1639
    %v1641 = vrot.slane %v1636, %v1640
    %v1651 = vunpack.c.l.b16 %v1628
    %v1652 = vunpack.c.l.b16 %v1629
    %v1653 = vunpack.c.l.b16 %v1630
    %v1654 = vunpack.c.l.b16 %v1631
    %v1655 = vunpack.c.l.b16 %v1632
    %v1656 = vunpack.c.l.b16 %v1633
    %v1657 = vunpack.c.l.b16 %v1634
    %v1658 = vunpack.c.l.b16 %v1635
    %v1659 = vpack.c.b16 %v1652, %v1651
    %v1660 = vpack.c.b16 %v1654, %v1653
    %v1661 = vpack.c.b16 %v1656, %v1655
    %v1662 = vpack.c.b16 %v1658, %v1657
    %vm1667 = vcmask 523264
    %v1669 = vsel %vm1667, %v1596, 0
    %v1672 = vsel %vm1667, %v1597, 0
    %v1675 = vsel %vm1667, %v1598, 0
    %v1678 = vsel %vm1667, %v1599, 0
    %v1681 = vsel %vm1667, %v1600, 0
    %v1684 = vsel %vm1667, %v1601, 0
    %v1687 = vsel %vm1667, %v1602, 0
    %v1690 = vsel %vm1667, %v1603, 0
    %v1693 = vsel %vm1667, %v1604, 0
    %v1696 = vsel %vm1667, %v1605, 0
    %v1699 = vsel %vm1667, %v1606, 0
    %v1702 = vsel %vm1667, %v1607, 0
    %v1705 = vsel %vm1667, %v1608, 0
    %v1708 = vsel %vm1667, %v1609, 0
    %v1711 = vsel %vm1667, %v1610, 0
    %v1714 = vsel %vm1667, %v1611, 0
    %v1717 = vsel %vm1667, %v1612, 0
    %v1720 = vsel %vm1667, %v1613, 0
    %v1723 = vsel %vm1667, %v1614, 0
    %v1726 = vsel %vm1667, %v1615, 0
    %v1729 = vsel %vm1667, %v1616, 0
    %v1732 = vsel %vm1667, %v1617, 0
    %v1735 = vsel %vm1667, %v1618, 0
    %v1738 = vsel %vm1667, %v1619, 0
    %v1741 = vsel %vm1667, %v1620, 0
    %v1744 = vsel %vm1667, %v1621, 0
    %v1747 = vsel %vm1667, %v1622, 0
    %v1750 = vsel %vm1667, %v1623, 0
    %v1753 = vsel %vm1667, %v1624, 0
    %v1756 = vsel %vm1667, %v1625, 0
    %v1759 = vsel %vm1667, %v1626, 0
    %v1762 = vsel %vm1667, %v1627, 0
    %1764 = vmatprep.subr.bf16.mxu0 0
    %1765 = vmatpush1.bf16.msra.mxu0 0
    %1766 = vmatprep.subr.bf16.mxu0 0
    %1767 = vmatpush1.bf16.msra.mxu0 0
    %1768 = vmatprep.subr.bf16.mxu0 0
    %1769 = vmatpush1.bf16.msra.mxu0 0
    %1770 = vmatprep.subr.bf16.mxu0 0
    %1771 = vmatpush1.bf16.msra.mxu0 0
    %1772 = vmatprep.subr.bf16.mxu0 0
    %1773 = vmatpush1.bf16.msra.mxu0 %v1662
    %1774 = vmatprep.subr.bf16.mxu0 0
    %1775 = vmatpush1.bf16.msra.mxu0 %v1661
    %1776 = vmatprep.subr.bf16.mxu0 0
    %1777 = vmatpush1.bf16.msra.mxu0 %v1660
    %1778 = vmatprep.subr.bf16.mxu0 0
    %1779 = vmatpush1.bf16.msra.mxu0 %v1659
    %1780 = vmatprep.subr.bf16.mxu0 0
    %1781 = vmatpush2.bf16.msra.mxu0 0
    %1782 = vmatprep.subr.bf16.mxu0 0
    %1783 = vmatpush2.bf16.msra.mxu0 0
    %1784 = vmatprep.subr.bf16.mxu0 0
    %1785 = vmatpush2.bf16.msra.mxu0 0
    %1786 = vmatprep.subr.bf16.mxu0 0
    %1787 = vmatpush2.bf16.msra.mxu0 0
    %1788 = vmatprep.subr.bf16.mxu0 0
    %1789 = vmatpush2.bf16.msra.mxu0 0
    %1790 = vmatprep.subr.bf16.mxu0 0
    %1791 = vmatpush2.bf16.msra.mxu0 0
    %1792 = vmatprep.subr.bf16.mxu0 0
    %1793 = vmatpush2.bf16.msra.mxu0 0
    %1794 = vmatprep.subr.bf16.mxu0 0
    %1795 = vmatpush2.bf16.msra.mxu0 0
    %1796 = vmatprep.mubr.bf16.mxu0 0
    %1797 = vmatmul.mubr.bf16.gmra.mxu0 %v1669
    %v1798 = vpop.f32.mrf.mxu0
    %v1799 = vadd.f32 %v1641, %v1798
    %v1800 = vpop.f32.mrf.mxu0
    %v1801 = vpop.f32.mrf.mxu0
    %v1802 = vadd.f32 %v1641, %v1801
    %v1803 = vpop.f32.mrf.mxu0
    %1804 = vmatprep.mubr.bf16.mxu0 0
    %1805 = vmatmul.mubr.bf16.gmra.mxu0 %v1672
    %v1806 = vpop.f32.mrf.mxu0
    %v1807 = vadd.f32 %v1641, %v1806
    %v1808 = vpop.f32.mrf.mxu0
    %v1809 = vpop.f32.mrf.mxu0
    %v1810 = vadd.f32 %v1641, %v1809
    %v1811 = vpop.f32.mrf.mxu0
    %1812 = vmatprep.mubr.bf16.mxu0 0
    %1813 = vmatmul.mubr.bf16.gmra.mxu0 %v1675
    %v1814 = vpop.f32.mrf.mxu0
    %v1815 = vadd.f32 %v1641, %v1814
    %v1816 = vpop.f32.mrf.mxu0
    %v1817 = vpop.f32.mrf.mxu0
    %v1818 = vadd.f32 %v1641, %v1817
    %v1819 = vpop.f32.mrf.mxu0
    %1820 = vmatprep.mubr.bf16.mxu0 0
    %1821 = vmatmul.mubr.bf16.gmra.mxu0 %v1678
    %v1822 = vpop.f32.mrf.mxu0
    %v1823 = vadd.f32 %v1641, %v1822
    %v1824 = vpop.f32.mrf.mxu0
    %v1825 = vpop.f32.mrf.mxu0
    %v1826 = vadd.f32 %v1641, %v1825
    %v1827 = vpop.f32.mrf.mxu0
    %1828 = vmatprep.mubr.bf16.mxu0 0
    %1829 = vmatmul.mubr.bf16.gmra.mxu0 %v1681
    %v1830 = vpop.f32.mrf.mxu0
    %v1831 = vadd.f32 %v1641, %v1830
    %v1832 = vpop.f32.mrf.mxu0
    %v1833 = vpop.f32.mrf.mxu0
    %v1834 = vadd.f32 %v1641, %v1833
    %v1835 = vpop.f32.mrf.mxu0
    %1836 = vmatprep.mubr.bf16.mxu0 0
    %1837 = vmatmul.mubr.bf16.gmra.mxu0 %v1684
    %v1838 = vpop.f32.mrf.mxu0
    %v1839 = vadd.f32 %v1641, %v1838
    %v1840 = vpop.f32.mrf.mxu0
    %v1841 = vpop.f32.mrf.mxu0
    %v1842 = vadd.f32 %v1641, %v1841
    %v1843 = vpop.f32.mrf.mxu0
    %1844 = vmatprep.mubr.bf16.mxu0 0
    %1845 = vmatmul.mubr.bf16.gmra.mxu0 %v1687
    %v1846 = vpop.f32.mrf.mxu0
    %v1847 = vadd.f32 %v1641, %v1846
    %v1848 = vpop.f32.mrf.mxu0
    %v1849 = vpop.f32.mrf.mxu0
    %v1850 = vadd.f32 %v1641, %v1849
    %v1851 = vpop.f32.mrf.mxu0
    %1852 = vmatprep.mubr.bf16.mxu0 0
    %1853 = vmatmul.mubr.bf16.gmra.mxu0 %v1690
    %v1854 = vpop.f32.mrf.mxu0
    %v1855 = vadd.f32 %v1641, %v1854
    %v1856 = vpop.f32.mrf.mxu0
    %v1857 = vpop.f32.mrf.mxu0
    %v1858 = vadd.f32 %v1641, %v1857
    %v1859 = vpop.f32.mrf.mxu0
    %1860 = vmatprep.mubr.bf16.mxu0 0
    %1861 = vmatmul.mubr.bf16.gmra.mxu0 %v1693
    %v1862 = vpop.f32.mrf.mxu0
    %v1863 = vadd.f32 %v1641, %v1862
    %v1864 = vpop.f32.mrf.mxu0
    %v1865 = vpop.f32.mrf.mxu0
    %v1866 = vadd.f32 %v1641, %v1865
    %v1867 = vpop.f32.mrf.mxu0
    %1868 = vmatprep.mubr.bf16.mxu0 0
    %1869 = vmatmul.mubr.bf16.gmra.mxu0 %v1696
    %v1870 = vpop.f32.mrf.mxu0
    %v1871 = vadd.f32 %v1641, %v1870
    %v1872 = vpop.f32.mrf.mxu0
    %v1873 = vpop.f32.mrf.mxu0
    %v1874 = vadd.f32 %v1641, %v1873
    %v1875 = vpop.f32.mrf.mxu0
    %1876 = vmatprep.mubr.bf16.mxu0 0
    %1877 = vmatmul.mubr.bf16.gmra.mxu0 %v1699
    %v1878 = vpop.f32.mrf.mxu0
    %v1879 = vadd.f32 %v1641, %v1878
    %v1880 = vpop.f32.mrf.mxu0
    %v1881 = vpop.f32.mrf.mxu0
    %v1882 = vadd.f32 %v1641, %v1881
    %v1883 = vpop.f32.mrf.mxu0
    %1884 = vmatprep.mubr.bf16.mxu0 0
    %1885 = vmatmul.mubr.bf16.gmra.mxu0 %v1702
    %v1886 = vpop.f32.mrf.mxu0
    %v1887 = vadd.f32 %v1641, %v1886
    %v1888 = vpop.f32.mrf.mxu0
    %v1889 = vpop.f32.mrf.mxu0
    %v1890 = vadd.f32 %v1641, %v1889
    %v1891 = vpop.f32.mrf.mxu0
    %1892 = vmatprep.mubr.bf16.mxu0 0
    %1893 = vmatmul.mubr.bf16.gmra.mxu0 %v1705
    %v1894 = vpop.f32.mrf.mxu0
    %v1895 = vadd.f32 %v1641, %v1894
    %v1896 = vpop.f32.mrf.mxu0
    %v1897 = vpop.f32.mrf.mxu0
    %v1898 = vadd.f32 %v1641, %v1897
    %v1899 = vpop.f32.mrf.mxu0
    %1900 = vmatprep.mubr.bf16.mxu0 0
    %1901 = vmatmul.mubr.bf16.gmra.mxu0 %v1708
    %v1902 = vpop.f32.mrf.mxu0
    %v1903 = vadd.f32 %v1641, %v1902
    %v1904 = vpop.f32.mrf.mxu0
    %v1905 = vpop.f32.mrf.mxu0
    %v1906 = vadd.f32 %v1641, %v1905
    %v1907 = vpop.f32.mrf.mxu0
    %1908 = vmatprep.mubr.bf16.mxu0 0
    %1909 = vmatmul.mubr.bf16.gmra.mxu0 %v1711
    %v1910 = vpop.f32.mrf.mxu0
    %v1911 = vadd.f32 %v1641, %v1910
    %v1912 = vpop.f32.mrf.mxu0
    %v1913 = vpop.f32.mrf.mxu0
    %v1914 = vadd.f32 %v1641, %v1913
    %v1915 = vpop.f32.mrf.mxu0
    %1916 = vmatprep.mubr.bf16.mxu0 0
    %1917 = vmatmul.mubr.bf16.gmra.mxu0 %v1714
    %v1918 = vpop.f32.mrf.mxu0
    %v1919 = vadd.f32 %v1641, %v1918
    %v1920 = vpop.f32.mrf.mxu0
    %v1921 = vpop.f32.mrf.mxu0
    %v1922 = vadd.f32 %v1641, %v1921
    %v1923 = vpop.f32.mrf.mxu0
    %1924 = vmatprep.mubr.bf16.mxu0 0
    %1925 = vmatmul.mubr.bf16.gmra.mxu0 %v1717
    %v1926 = vpop.f32.mrf.mxu0
    %v1927 = vadd.f32 %v1641, %v1926
    %v1928 = vpop.f32.mrf.mxu0
    %v1929 = vpop.f32.mrf.mxu0
    %v1930 = vadd.f32 %v1641, %v1929
    %v1931 = vpop.f32.mrf.mxu0
    %1932 = vmatprep.mubr.bf16.mxu0 0
    %1933 = vmatmul.mubr.bf16.gmra.mxu0 %v1720
    %v1934 = vpop.f32.mrf.mxu0
    %v1935 = vadd.f32 %v1641, %v1934
    %v1936 = vpop.f32.mrf.mxu0
    %v1937 = vpop.f32.mrf.mxu0
    %v1938 = vadd.f32 %v1641, %v1937
    %v1939 = vpop.f32.mrf.mxu0
    %1940 = vmatprep.mubr.bf16.mxu0 0
    %1941 = vmatmul.mubr.bf16.gmra.mxu0 %v1723
    %v1942 = vpop.f32.mrf.mxu0
    %v1943 = vadd.f32 %v1641, %v1942
    %v1944 = vpop.f32.mrf.mxu0
    %v1945 = vpop.f32.mrf.mxu0
    %v1946 = vadd.f32 %v1641, %v1945
    %v1947 = vpop.f32.mrf.mxu0
    %1948 = vmatprep.mubr.bf16.mxu0 0
    %1949 = vmatmul.mubr.bf16.gmra.mxu0 %v1726
    %v1950 = vpop.f32.mrf.mxu0
    %v1951 = vadd.f32 %v1641, %v1950
    %v1952 = vpop.f32.mrf.mxu0
    %v1953 = vpop.f32.mrf.mxu0
    %v1954 = vadd.f32 %v1641, %v1953
    %v1955 = vpop.f32.mrf.mxu0
    %1956 = vmatprep.mubr.bf16.mxu0 0
    %1957 = vmatmul.mubr.bf16.gmra.mxu0 %v1729
    %v1958 = vpop.f32.mrf.mxu0
    %v1959 = vadd.f32 %v1641, %v1958
    %v1960 = vpop.f32.mrf.mxu0
    %v1961 = vpop.f32.mrf.mxu0
    %v1962 = vadd.f32 %v1641, %v1961
    %v1963 = vpop.f32.mrf.mxu0
    %1964 = vmatprep.mubr.bf16.mxu0 0
    %1965 = vmatmul.mubr.bf16.gmra.mxu0 %v1732
    %v1966 = vpop.f32.mrf.mxu0
    %v1967 = vadd.f32 %v1641, %v1966
    %v1968 = vpop.f32.mrf.mxu0
    %v1969 = vpop.f32.mrf.mxu0
    %v1970 = vadd.f32 %v1641, %v1969
    %v1971 = vpop.f32.mrf.mxu0
    %1972 = vmatprep.mubr.bf16.mxu0 0
    %1973 = vmatmul.mubr.bf16.gmra.mxu0 %v1735
    %v1974 = vpop.f32.mrf.mxu0
    %v1975 = vadd.f32 %v1641, %v1974
    %v1976 = vpop.f32.mrf.mxu0
    %v1977 = vpop.f32.mrf.mxu0
    %v1978 = vadd.f32 %v1641, %v1977
    %v1979 = vpop.f32.mrf.mxu0
    %1980 = vmatprep.mubr.bf16.mxu0 0
    %1981 = vmatmul.mubr.bf16.gmra.mxu0 %v1738
    %v1982 = vpop.f32.mrf.mxu0
    %v1983 = vadd.f32 %v1641, %v1982
    %v1984 = vpop.f32.mrf.mxu0
    %v1985 = vpop.f32.mrf.mxu0
    %v1986 = vadd.f32 %v1641, %v1985
    %v1987 = vpop.f32.mrf.mxu0
    %1988 = vmatprep.mubr.bf16.mxu0 0
    %1989 = vmatmul.mubr.bf16.gmra.mxu0 %v1741
    %v1990 = vpop.f32.mrf.mxu0
    %v1991 = vadd.f32 %v1641, %v1990
    %v1992 = vpop.f32.mrf.mxu0
    %v1993 = vpop.f32.mrf.mxu0
    %v1994 = vadd.f32 %v1641, %v1993
    %v1995 = vpop.f32.mrf.mxu0
    %1996 = vmatprep.mubr.bf16.mxu0 0
    %1997 = vmatmul.mubr.bf16.gmra.mxu0 %v1744
    %v1998 = vpop.f32.mrf.mxu0
    %v1999 = vadd.f32 %v1641, %v1998
    %v2000 = vpop.f32.mrf.mxu0
    %v2001 = vpop.f32.mrf.mxu0
    %v2002 = vadd.f32 %v1641, %v2001
    %v2003 = vpop.f32.mrf.mxu0
    %2004 = vmatprep.mubr.bf16.mxu0 0
    %2005 = vmatmul.mubr.bf16.gmra.mxu0 %v1747
    %v2006 = vpop.f32.mrf.mxu0
    %v2007 = vadd.f32 %v1641, %v2006
    %v2008 = vpop.f32.mrf.mxu0
    %v2009 = vpop.f32.mrf.mxu0
    %v2010 = vadd.f32 %v1641, %v2009
    %v2011 = vpop.f32.mrf.mxu0
    %2012 = vmatprep.mubr.bf16.mxu0 0
    %2013 = vmatmul.mubr.bf16.gmra.mxu0 %v1750
    %v2014 = vpop.f32.mrf.mxu0
    %v2015 = vadd.f32 %v1641, %v2014
    %v2016 = vpop.f32.mrf.mxu0
    %v2017 = vpop.f32.mrf.mxu0
    %v2018 = vadd.f32 %v1641, %v2017
    %v2019 = vpop.f32.mrf.mxu0
    %2020 = vmatprep.mubr.bf16.mxu0 0
    %2021 = vmatmul.mubr.bf16.gmra.mxu0 %v1753
    %v2022 = vpop.f32.mrf.mxu0
    %v2023 = vadd.f32 %v1641, %v2022
    %v2024 = vpop.f32.mrf.mxu0
    %v2025 = vpop.f32.mrf.mxu0
    %v2026 = vadd.f32 %v1641, %v2025
    %v2027 = vpop.f32.mrf.mxu0
    %2028 = vmatprep.mubr.bf16.mxu0 0
    %2029 = vmatmul.mubr.bf16.gmra.mxu0 %v1756
    %v2030 = vpop.f32.mrf.mxu0
    %v2031 = vadd.f32 %v1641, %v2030
    %v2032 = vpop.f32.mrf.mxu0
    %v2033 = vpop.f32.mrf.mxu0
    %v2034 = vadd.f32 %v1641, %v2033
    %v2035 = vpop.f32.mrf.mxu0
    %2036 = vmatprep.mubr.bf16.mxu0 0
    %2037 = vmatmul.mubr.bf16.gmra.mxu0 %v1759
    %v2038 = vpop.f32.mrf.mxu0
    %v2039 = vadd.f32 %v1641, %v2038
    %v2040 = vpop.f32.mrf.mxu0
    %v2041 = vpop.f32.mrf.mxu0
    %v2042 = vadd.f32 %v1641, %v2041
    %v2043 = vpop.f32.mrf.mxu0
    %2044 = vmatprep.mubr.bf16.mxu0 0
    %2045 = vmatmul.mubr.bf16.gmra.mxu0 %v1762
    %v2046 = vpop.f32.mrf.mxu0
    %v2047 = vadd.f32 %v1641, %v2046
    %v2048 = vpop.f32.mrf.mxu0
    %v2049 = vpop.f32.mrf.mxu0
    %v2050 = vadd.f32 %v1641, %v2049
    %v2051 = vpop.f32.mrf.mxu0
    %2052 = vdwg.mxu0
    %vm2053 = vcmp.ge.f32.partialorder %v1799, 0.0
    %vm2054 = vcmp.ge.f32.partialorder %v1802, 0.0
    %vm2055 = vcmp.ge.f32.partialorder %v1807, 0.0
    %vm2056 = vcmp.ge.f32.partialorder %v1810, 0.0
    %vm2057 = vcmp.ge.f32.partialorder %v1815, 0.0
    %vm2058 = vcmp.ge.f32.partialorder %v1818, 0.0
    %vm2059 = vcmp.ge.f32.partialorder %v1823, 0.0
    %vm2060 = vcmp.ge.f32.partialorder %v1826, 0.0
    %vm2061 = vcmp.ge.f32.partialorder %v1831, 0.0
    %vm2062 = vcmp.ge.f32.partialorder %v1834, 0.0
    %vm2063 = vcmp.ge.f32.partialorder %v1839, 0.0
    %vm2064 = vcmp.ge.f32.partialorder %v1842, 0.0
    %vm2065 = vcmp.ge.f32.partialorder %v1847, 0.0
    %vm2066 = vcmp.ge.f32.partialorder %v1850, 0.0
    %vm2067 = vcmp.ge.f32.partialorder %v1855, 0.0
    %vm2068 = vcmp.ge.f32.partialorder %v1858, 0.0
    %vm2069 = vcmp.ge.f32.partialorder %v1863, 0.0
    %vm2070 = vcmp.ge.f32.partialorder %v1866, 0.0
    %vm2071 = vcmp.ge.f32.partialorder %v1871, 0.0
    %vm2072 = vcmp.ge.f32.partialorder %v1874, 0.0
    %vm2073 = vcmp.ge.f32.partialorder %v1879, 0.0
    %vm2074 = vcmp.ge.f32.partialorder %v1882, 0.0
    %vm2075 = vcmp.ge.f32.partialorder %v1887, 0.0
    %vm2076 = vcmp.ge.f32.partialorder %v1890, 0.0
    %vm2077 = vcmp.ge.f32.partialorder %v1895, 0.0
    %vm2078 = vcmp.ge.f32.partialorder %v1898, 0.0
    %vm2079 = vcmp.ge.f32.partialorder %v1903, 0.0
    %vm2080 = vcmp.ge.f32.partialorder %v1906, 0.0
    %vm2081 = vcmp.ge.f32.partialorder %v1911, 0.0
    %vm2082 = vcmp.ge.f32.partialorder %v1914, 0.0
    %vm2083 = vcmp.ge.f32.partialorder %v1919, 0.0
    %vm2084 = vcmp.ge.f32.partialorder %v1922, 0.0
    %vm2085 = vcmp.ge.f32.partialorder %v1927, 0.0
    %vm2086 = vcmp.ge.f32.partialorder %v1930, 0.0
    %vm2087 = vcmp.ge.f32.partialorder %v1935, 0.0
    %vm2088 = vcmp.ge.f32.partialorder %v1938, 0.0
    %vm2089 = vcmp.ge.f32.partialorder %v1943, 0.0
    %vm2090 = vcmp.ge.f32.partialorder %v1946, 0.0
    %vm2091 = vcmp.ge.f32.partialorder %v1951, 0.0
    %vm2092 = vcmp.ge.f32.partialorder %v1954, 0.0
    %vm2093 = vcmp.ge.f32.partialorder %v1959, 0.0
    %vm2094 = vcmp.ge.f32.partialorder %v1962, 0.0
    %vm2095 = vcmp.ge.f32.partialorder %v1967, 0.0
    %vm2096 = vcmp.ge.f32.partialorder %v1970, 0.0
    %vm2097 = vcmp.ge.f32.partialorder %v1975, 0.0
    %vm2098 = vcmp.ge.f32.partialorder %v1978, 0.0
    %vm2099 = vcmp.ge.f32.partialorder %v1983, 0.0
    %vm2100 = vcmp.ge.f32.partialorder %v1986, 0.0
    %vm2101 = vcmp.ge.f32.partialorder %v1991, 0.0
    %vm2102 = vcmp.ge.f32.partialorder %v1994, 0.0
    %vm2103 = vcmp.ge.f32.partialorder %v1999, 0.0
    %vm2104 = vcmp.ge.f32.partialorder %v2002, 0.0
    %vm2105 = vcmp.ge.f32.partialorder %v2007, 0.0
    %vm2106 = vcmp.ge.f32.partialorder %v2010, 0.0
    %vm2107 = vcmp.ge.f32.partialorder %v2015, 0.0
    %vm2108 = vcmp.ge.f32.partialorder %v2018, 0.0
    %vm2109 = vcmp.ge.f32.partialorder %v2023, 0.0
    %vm2110 = vcmp.ge.f32.partialorder %v2026, 0.0
    %vm2111 = vcmp.ge.f32.partialorder %v2031, 0.0
    %vm2112 = vcmp.ge.f32.partialorder %v2034, 0.0
    %vm2113 = vcmp.ge.f32.partialorder %v2039, 0.0
    %vm2114 = vcmp.ge.f32.partialorder %v2042, 0.0
    %vm2115 = vcmp.ge.f32.partialorder %v2047, 0.0
    %vm2116 = vcmp.ge.f32.partialorder %v2050, 0.0
    %v2117 = vmul.f32 %v1799, 0.1
    %v2118 = vmul.f32 %v1802, 0.1
    %v2119 = vmul.f32 %v1807, 0.1
    %v2120 = vmul.f32 %v1810, 0.1
    %v2121 = vmul.f32 %v1815, 0.1
    %v2122 = vmul.f32 %v1818, 0.1
    %v2123 = vmul.f32 %v1823, 0.1
    %v2124 = vmul.f32 %v1826, 0.1
    %v2125 = vmul.f32 %v1831, 0.1
    %v2126 = vmul.f32 %v1834, 0.1
    %v2127 = vmul.f32 %v1839, 0.1
    %v2128 = vmul.f32 %v1842, 0.1
    %v2129 = vmul.f32 %v1847, 0.1
    %v2130 = vmul.f32 %v1850, 0.1
    %v2131 = vmul.f32 %v1855, 0.1
    %v2132 = vmul.f32 %v1858, 0.1
    %v2133 = vmul.f32 %v1863, 0.1
    %v2134 = vmul.f32 %v1866, 0.1
    %v2135 = vmul.f32 %v1871, 0.1
    %v2136 = vmul.f32 %v1874, 0.1
    %v2137 = vmul.f32 %v1879, 0.1
    %v2138 = vmul.f32 %v1882, 0.1
    %v2139 = vmul.f32 %v1887, 0.1
    %v2140 = vmul.f32 %v1890, 0.1
    %v2141 = vmul.f32 %v1895, 0.1
    %v2142 = vmul.f32 %v1898, 0.1
    %v2143 = vmul.f32 %v1903, 0.1
    %v2144 = vmul.f32 %v1906, 0.1
    %v2145 = vmul.f32 %v1911, 0.1
    %v2146 = vmul.f32 %v1914, 0.1
    %v2147 = vmul.f32 %v1919, 0.1
    %v2148 = vmul.f32 %v1922, 0.1
    %v2149 = vmul.f32 %v1927, 0.1
    %v2150 = vmul.f32 %v1930, 0.1
    %v2151 = vmul.f32 %v1935, 0.1
    %v2152 = vmul.f32 %v1938, 0.1
    %v2153 = vmul.f32 %v1943, 0.1
    %v2154 = vmul.f32 %v1946, 0.1
    %v2155 = vmul.f32 %v1951, 0.1
    %v2156 = vmul.f32 %v1954, 0.1
    %v2157 = vmul.f32 %v1959, 0.1
    %v2158 = vmul.f32 %v1962, 0.1
    %v2159 = vmul.f32 %v1967, 0.1
    %v2160 = vmul.f32 %v1970, 0.1
    %v2161 = vmul.f32 %v1975, 0.1
    %v2162 = vmul.f32 %v1978, 0.1
    %v2163 = vmul.f32 %v1983, 0.1
    %v2164 = vmul.f32 %v1986, 0.1
    %v2165 = vmul.f32 %v1991, 0.1
    %v2166 = vmul.f32 %v1994, 0.1
    %v2167 = vmul.f32 %v1999, 0.1
    %v2168 = vmul.f32 %v2002, 0.1
    %v2169 = vmul.f32 %v2007, 0.1
    %v2170 = vmul.f32 %v2010, 0.1
    %v2171 = vmul.f32 %v2015, 0.1
    %v2172 = vmul.f32 %v2018, 0.1
    %v2173 = vmul.f32 %v2023, 0.1
    %v2174 = vmul.f32 %v2026, 0.1
    %v2175 = vmul.f32 %v2031, 0.1
    %v2176 = vmul.f32 %v2034, 0.1
    %v2177 = vmul.f32 %v2039, 0.1
    %v2178 = vmul.f32 %v2042, 0.1
    %v2179 = vmul.f32 %v2047, 0.1
    %v2180 = vmul.f32 %v2050, 0.1
    %v2181 = vsel %vm2053, %v1799, %v2117
    %v2182 = vsel %vm2054, %v1802, %v2118
    %v2183 = vsel %vm2055, %v1807, %v2119
    %v2184 = vsel %vm2056, %v1810, %v2120
    %v2185 = vsel %vm2057, %v1815, %v2121
    %v2186 = vsel %vm2058, %v1818, %v2122
    %v2187 = vsel %vm2059, %v1823, %v2123
    %v2188 = vsel %vm2060, %v1826, %v2124
    %v2189 = vsel %vm2061, %v1831, %v2125
    %v2190 = vsel %vm2062, %v1834, %v2126
    %v2191 = vsel %vm2063, %v1839, %v2127
    %v2192 = vsel %vm2064, %v1842, %v2128
    %v2193 = vsel %vm2065, %v1847, %v2129
    %v2194 = vsel %vm2066, %v1850, %v2130
    %v2195 = vsel %vm2067, %v1855, %v2131
    %v2196 = vsel %vm2068, %v1858, %v2132
    %v2197 = vsel %vm2069, %v1863, %v2133
    %v2198 = vsel %vm2070, %v1866, %v2134
    %v2199 = vsel %vm2071, %v1871, %v2135
    %v2200 = vsel %vm2072, %v1874, %v2136
    %v2201 = vsel %vm2073, %v1879, %v2137
    %v2202 = vsel %vm2074, %v1882, %v2138
    %v2203 = vsel %vm2075, %v1887, %v2139
    %v2204 = vsel %vm2076, %v1890, %v2140
    %v2205 = vsel %vm2077, %v1895, %v2141
    %v2206 = vsel %vm2078, %v1898, %v2142
    %v2207 = vsel %vm2079, %v1903, %v2143
    %v2208 = vsel %vm2080, %v1906, %v2144
    %v2209 = vsel %vm2081, %v1911, %v2145
    %v2210 = vsel %vm2082, %v1914, %v2146
    %v2211 = vsel %vm2083, %v1919, %v2147
    %v2212 = vsel %vm2084, %v1922, %v2148
    %v2213 = vsel %vm2085, %v1927, %v2149
    %v2214 = vsel %vm2086, %v1930, %v2150
    %v2215 = vsel %vm2087, %v1935, %v2151
    %v2216 = vsel %vm2088, %v1938, %v2152
    %v2217 = vsel %vm2089, %v1943, %v2153
    %v2218 = vsel %vm2090, %v1946, %v2154
    %v2219 = vsel %vm2091, %v1951, %v2155
    %v2220 = vsel %vm2092, %v1954, %v2156
    %v2221 = vsel %vm2093, %v1959, %v2157
    %v2222 = vsel %vm2094, %v1962, %v2158
    %v2223 = vsel %vm2095, %v1967, %v2159
    %v2224 = vsel %vm2096, %v1970, %v2160
    %v2225 = vsel %vm2097, %v1975, %v2161
    %v2226 = vsel %vm2098, %v1978, %v2162
    %v2227 = vsel %vm2099, %v1983, %v2163
    %v2228 = vsel %vm2100, %v1986, %v2164
    %v2229 = vsel %vm2101, %v1991, %v2165
    %v2230 = vsel %vm2102, %v1994, %v2166
    %v2231 = vsel %vm2103, %v1999, %v2167
    %v2232 = vsel %vm2104, %v2002, %v2168
    %v2233 = vsel %vm2105, %v2007, %v2169
    %v2234 = vsel %vm2106, %v2010, %v2170
    %v2235 = vsel %vm2107, %v2015, %v2171
    %v2236 = vsel %vm2108, %v2018, %v2172
    %v2237 = vsel %vm2109, %v2023, %v2173
    %v2238 = vsel %vm2110, %v2026, %v2174
    %v2239 = vsel %vm2111, %v2031, %v2175
    %v2240 = vsel %vm2112, %v2034, %v2176
    %v2241 = vsel %vm2113, %v2039, %v2177
    %v2242 = vsel %vm2114, %v2042, %v2178
    %v2243 = vsel %vm2115, %v2047, %v2179
    %v2244 = vsel %vm2116, %v2050, %v2180
    %v2245 = vpack.c.bf16 %v2182, %v2181
    %v2246 = vpack.c.bf16 %v2184, %v2183
    %v2247 = vpack.c.bf16 %v2186, %v2185
    %v2248 = vpack.c.bf16 %v2188, %v2187
    %v2249 = vpack.c.bf16 %v2190, %v2189
    %v2250 = vpack.c.bf16 %v2192, %v2191
    %v2251 = vpack.c.bf16 %v2194, %v2193
    %v2252 = vpack.c.bf16 %v2196, %v2195
    %v2253 = vpack.c.bf16 %v2198, %v2197
    %v2254 = vpack.c.bf16 %v2200, %v2199
    %v2255 = vpack.c.bf16 %v2202, %v2201
    %v2256 = vpack.c.bf16 %v2204, %v2203
    %v2257 = vpack.c.bf16 %v2206, %v2205
    %v2258 = vpack.c.bf16 %v2208, %v2207
    %v2259 = vpack.c.bf16 %v2210, %v2209
    %v2260 = vpack.c.bf16 %v2212, %v2211
    %v2261 = vpack.c.bf16 %v2214, %v2213
    %v2262 = vpack.c.bf16 %v2216, %v2215
    %v2263 = vpack.c.bf16 %v2218, %v2217
    %v2264 = vpack.c.bf16 %v2220, %v2219
    %v2265 = vpack.c.bf16 %v2222, %v2221
    %v2266 = vpack.c.bf16 %v2224, %v2223
    %v2267 = vpack.c.bf16 %v2226, %v2225
    %v2268 = vpack.c.bf16 %v2228, %v2227
    %v2269 = vpack.c.bf16 %v2230, %v2229
    %v2270 = vpack.c.bf16 %v2232, %v2231
    %v2271 = vpack.c.bf16 %v2234, %v2233
    %v2272 = vpack.c.bf16 %v2236, %v2235
    %v2273 = vpack.c.bf16 %v2238, %v2237
    %v2274 = vpack.c.bf16 %v2240, %v2239
    %v2275 = vpack.c.bf16 %v2242, %v2241
    %v2276 = vpack.c.bf16 %v2244, %v2243
    %v2277 = vld [vmem:[%s9] sm:$0xf]
    %v2278 = vld [vmem:[%s9 + $0x4] sm:$0xf]
    %v2279 = vld [vmem:[%s9 + $0x8] sm:$0xf]
    %v2280 = vld [vmem:[%s9 + $0xc] sm:$0xf]
    %v2281 = vld [vmem:[%s9 + $0x10] sm:$0xf]
    %v2282 = vld [vmem:[%s9 + $0x14] sm:$0xf]
    %v2283 = vld [vmem:[%s9 + $0x18] sm:$0xf]
    %v2284 = vld [vmem:[%s9 + $0x1c] sm:$0xf]
    %v2285 = vld [vmem:[%s10] sm:$0x1]
    %v2287 = vlaneseq
    %v2288 = vshrl.u32 %v2287, 7
    %v2289 = vsub.s32 0, %v2288
    %v2290 = vrot.slane %v2285, %v2289
    %v2300 = vunpack.c.l.b16 %v2277
    %v2301 = vunpack.c.l.b16 %v2278
    %v2302 = vunpack.c.l.b16 %v2279
    %v2303 = vunpack.c.l.b16 %v2280
    %v2304 = vunpack.c.l.b16 %v2281
    %v2305 = vunpack.c.l.b16 %v2282
    %v2306 = vunpack.c.l.b16 %v2283
    %v2307 = vunpack.c.l.b16 %v2284
    %v2308 = vpack.c.b16 %v2301, %v2300
    %v2309 = vpack.c.b16 %v2303, %v2302
    %v2310 = vpack.c.b16 %v2305, %v2304
    %v2311 = vpack.c.b16 %v2307, %v2306
    %v2317 = vsel %vm1667, %v2245, 0
    %v2320 = vsel %vm1667, %v2246, 0
    %v2323 = vsel %vm1667, %v2247, 0
    %v2326 = vsel %vm1667, %v2248, 0
    %v2329 = vsel %vm1667, %v2249, 0
    %v2332 = vsel %vm1667, %v2250, 0
    %v2335 = vsel %vm1667, %v2251, 0
    %v2338 = vsel %vm1667, %v2252, 0
    %v2341 = vsel %vm1667, %v2253, 0
    %v2344 = vsel %vm1667, %v2254, 0
    %v2347 = vsel %vm1667, %v2255, 0
    %v2350 = vsel %vm1667, %v2256, 0
    %v2353 = vsel %vm1667, %v2257, 0
    %v2356 = vsel %vm1667, %v2258, 0
    %v2359 = vsel %vm1667, %v2259, 0
    %v2362 = vsel %vm1667, %v2260, 0
    %v2365 = vsel %vm1667, %v2261, 0
    %v2368 = vsel %vm1667, %v2262, 0
    %v2371 = vsel %vm1667, %v2263, 0
    %v2374 = vsel %vm1667, %v2264, 0
    %v2377 = vsel %vm1667, %v2265, 0
    %v2380 = vsel %vm1667, %v2266, 0
    %v2383 = vsel %vm1667, %v2267, 0
    %v2386 = vsel %vm1667, %v2268, 0
    %v2389 = vsel %vm1667, %v2269, 0
    %v2392 = vsel %vm1667, %v2270, 0
    %v2395 = vsel %vm1667, %v2271, 0
    %v2398 = vsel %vm1667, %v2272, 0
    %v2401 = vsel %vm1667, %v2273, 0
    %v2404 = vsel %vm1667, %v2274, 0
    %v2407 = vsel %vm1667, %v2275, 0
    %v2410 = vsel %vm1667, %v2276, 0
    %2412 = vmatprep.subr.bf16.mxu0 0
    %2413 = vmatpush1.bf16.msra.mxu0 0
    %2414 = vmatprep.subr.bf16.mxu0 0
    %2415 = vmatpush1.bf16.msra.mxu0 0
    %2416 = vmatprep.subr.bf16.mxu0 0
    %2417 = vmatpush1.bf16.msra.mxu0 0
    %2418 = vmatprep.subr.bf16.mxu0 0
    %2419 = vmatpush1.bf16.msra.mxu0 0
    %2420 = vmatprep.subr.bf16.mxu0 0
    %2421 = vmatpush1.bf16.msra.mxu0 %v2311
    %2422 = vmatprep.subr.bf16.mxu0 0
    %2423 = vmatpush1.bf16.msra.mxu0 %v2310
    %2424 = vmatprep.subr.bf16.mxu0 0
    %2425 = vmatpush1.bf16.msra.mxu0 %v2309
    %2426 = vmatprep.subr.bf16.mxu0 0
    %2427 = vmatpush1.bf16.msra.mxu0 %v2308
    %2428 = vmatprep.subr.bf16.mxu0 0
    %2429 = vmatpush2.bf16.msra.mxu0 0
    %2430 = vmatprep.subr.bf16.mxu0 0
    %2431 = vmatpush2.bf16.msra.mxu0 0
    %2432 = vmatprep.subr.bf16.mxu0 0
    %2433 = vmatpush2.bf16.msra.mxu0 0
    %2434 = vmatprep.subr.bf16.mxu0 0
    %2435 = vmatpush2.bf16.msra.mxu0 0
    %2436 = vmatprep.subr.bf16.mxu0 0
    %2437 = vmatpush2.bf16.msra.mxu0 0
    %2438 = vmatprep.subr.bf16.mxu0 0
    %2439 = vmatpush2.bf16.msra.mxu0 0
    %2440 = vmatprep.subr.bf16.mxu0 0
    %2441 = vmatpush2.bf16.msra.mxu0 0
    %2442 = vmatprep.subr.bf16.mxu0 0
    %2443 = vmatpush2.bf16.msra.mxu0 0
    %2444 = vmatprep.mubr.bf16.mxu0 0
    %2445 = vmatmul.mubr.bf16.gmra.mxu0 %v2317
    %v2446 = vpop.f32.mrf.mxu0
    %v2447 = vadd.f32 %v2290, %v2446
    %v2448 = vpop.f32.mrf.mxu0
    %v2449 = vpop.f32.mrf.mxu0
    %v2450 = vadd.f32 %v2290, %v2449
    %v2451 = vpop.f32.mrf.mxu0
    %2452 = vmatprep.mubr.bf16.mxu0 0
    %2453 = vmatmul.mubr.bf16.gmra.mxu0 %v2320
    %v2454 = vpop.f32.mrf.mxu0
    %v2455 = vadd.f32 %v2290, %v2454
    %v2456 = vpop.f32.mrf.mxu0
    %v2457 = vpop.f32.mrf.mxu0
    %v2458 = vadd.f32 %v2290, %v2457
    %v2459 = vpop.f32.mrf.mxu0
    %2460 = vmatprep.mubr.bf16.mxu0 0
    %2461 = vmatmul.mubr.bf16.gmra.mxu0 %v2323
    %v2462 = vpop.f32.mrf.mxu0
    %v2463 = vadd.f32 %v2290, %v2462
    %v2464 = vpop.f32.mrf.mxu0
    %v2465 = vpop.f32.mrf.mxu0
    %v2466 = vadd.f32 %v2290, %v2465
    %v2467 = vpop.f32.mrf.mxu0
    %2468 = vmatprep.mubr.bf16.mxu0 0
    %2469 = vmatmul.mubr.bf16.gmra.mxu0 %v2326
    %v2470 = vpop.f32.mrf.mxu0
    %v2471 = vadd.f32 %v2290, %v2470
    %v2472 = vpop.f32.mrf.mxu0
    %v2473 = vpop.f32.mrf.mxu0
    %v2474 = vadd.f32 %v2290, %v2473
    %v2475 = vpop.f32.mrf.mxu0
    %2476 = vmatprep.mubr.bf16.mxu0 0
    %2477 = vmatmul.mubr.bf16.gmra.mxu0 %v2329
    %v2478 = vpop.f32.mrf.mxu0
    %v2479 = vadd.f32 %v2290, %v2478
    %v2480 = vpop.f32.mrf.mxu0
    %v2481 = vpop.f32.mrf.mxu0
    %v2482 = vadd.f32 %v2290, %v2481
    %v2483 = vpop.f32.mrf.mxu0
    %2484 = vmatprep.mubr.bf16.mxu0 0
    %2485 = vmatmul.mubr.bf16.gmra.mxu0 %v2332
    %v2486 = vpop.f32.mrf.mxu0
    %v2487 = vadd.f32 %v2290, %v2486
    %v2488 = vpop.f32.mrf.mxu0
    %v2489 = vpop.f32.mrf.mxu0
    %v2490 = vadd.f32 %v2290, %v2489
    %v2491 = vpop.f32.mrf.mxu0
    %2492 = vmatprep.mubr.bf16.mxu0 0
    %2493 = vmatmul.mubr.bf16.gmra.mxu0 %v2335
    %v2494 = vpop.f32.mrf.mxu0
    %v2495 = vadd.f32 %v2290, %v2494
    %v2496 = vpop.f32.mrf.mxu0
    %v2497 = vpop.f32.mrf.mxu0
    %v2498 = vadd.f32 %v2290, %v2497
    %v2499 = vpop.f32.mrf.mxu0
    %2500 = vmatprep.mubr.bf16.mxu0 0
    %2501 = vmatmul.mubr.bf16.gmra.mxu0 %v2338
    %v2502 = vpop.f32.mrf.mxu0
    %v2503 = vadd.f32 %v2290, %v2502
    %v2504 = vpop.f32.mrf.mxu0
    %v2505 = vpop.f32.mrf.mxu0
    %v2506 = vadd.f32 %v2290, %v2505
    %v2507 = vpop.f32.mrf.mxu0
    %2508 = vmatprep.mubr.bf16.mxu0 0
    %2509 = vmatmul.mubr.bf16.gmra.mxu0 %v2341
    %v2510 = vpop.f32.mrf.mxu0
    %v2511 = vadd.f32 %v2290, %v2510
    %v2512 = vpop.f32.mrf.mxu0
    %v2513 = vpop.f32.mrf.mxu0
    %v2514 = vadd.f32 %v2290, %v2513
    %v2515 = vpop.f32.mrf.mxu0
    %2516 = vmatprep.mubr.bf16.mxu0 0
    %2517 = vmatmul.mubr.bf16.gmra.mxu0 %v2344
    %v2518 = vpop.f32.mrf.mxu0
    %v2519 = vadd.f32 %v2290, %v2518
    %v2520 = vpop.f32.mrf.mxu0
    %v2521 = vpop.f32.mrf.mxu0
    %v2522 = vadd.f32 %v2290, %v2521
    %v2523 = vpop.f32.mrf.mxu0
    %2524 = vmatprep.mubr.bf16.mxu0 0
    %2525 = vmatmul.mubr.bf16.gmra.mxu0 %v2347
    %v2526 = vpop.f32.mrf.mxu0
    %v2527 = vadd.f32 %v2290, %v2526
    %v2528 = vpop.f32.mrf.mxu0
    %v2529 = vpop.f32.mrf.mxu0
    %v2530 = vadd.f32 %v2290, %v2529
    %v2531 = vpop.f32.mrf.mxu0
    %2532 = vmatprep.mubr.bf16.mxu0 0
    %2533 = vmatmul.mubr.bf16.gmra.mxu0 %v2350
    %v2534 = vpop.f32.mrf.mxu0
    %v2535 = vadd.f32 %v2290, %v2534
    %v2536 = vpop.f32.mrf.mxu0
    %v2537 = vpop.f32.mrf.mxu0
    %v2538 = vadd.f32 %v2290, %v2537
    %v2539 = vpop.f32.mrf.mxu0
    %2540 = vmatprep.mubr.bf16.mxu0 0
    %2541 = vmatmul.mubr.bf16.gmra.mxu0 %v2353
    %v2542 = vpop.f32.mrf.mxu0
    %v2543 = vadd.f32 %v2290, %v2542
    %v2544 = vpop.f32.mrf.mxu0
    %v2545 = vpop.f32.mrf.mxu0
    %v2546 = vadd.f32 %v2290, %v2545
    %v2547 = vpop.f32.mrf.mxu0
    %2548 = vmatprep.mubr.bf16.mxu0 0
    %2549 = vmatmul.mubr.bf16.gmra.mxu0 %v2356
    %v2550 = vpop.f32.mrf.mxu0
    %v2551 = vadd.f32 %v2290, %v2550
    %v2552 = vpop.f32.mrf.mxu0
    %v2553 = vpop.f32.mrf.mxu0
    %v2554 = vadd.f32 %v2290, %v2553
    %v2555 = vpop.f32.mrf.mxu0
    %2556 = vmatprep.mubr.bf16.mxu0 0
    %2557 = vmatmul.mubr.bf16.gmra.mxu0 %v2359
    %v2558 = vpop.f32.mrf.mxu0
    %v2559 = vadd.f32 %v2290, %v2558
    %v2560 = vpop.f32.mrf.mxu0
    %v2561 = vpop.f32.mrf.mxu0
    %v2562 = vadd.f32 %v2290, %v2561
    %v2563 = vpop.f32.mrf.mxu0
    %2564 = vmatprep.mubr.bf16.mxu0 0
    %2565 = vmatmul.mubr.bf16.gmra.mxu0 %v2362
    %v2566 = vpop.f32.mrf.mxu0
    %v2567 = vadd.f32 %v2290, %v2566
    %v2568 = vpop.f32.mrf.mxu0
    %v2569 = vpop.f32.mrf.mxu0
    %v2570 = vadd.f32 %v2290, %v2569
    %v2571 = vpop.f32.mrf.mxu0
    %2572 = vmatprep.mubr.bf16.mxu0 0
    %2573 = vmatmul.mubr.bf16.gmra.mxu0 %v2365
    %v2574 = vpop.f32.mrf.mxu0
    %v2575 = vadd.f32 %v2290, %v2574
    %v2576 = vpop.f32.mrf.mxu0
    %v2577 = vpop.f32.mrf.mxu0
    %v2578 = vadd.f32 %v2290, %v2577
    %v2579 = vpop.f32.mrf.mxu0
    %2580 = vmatprep.mubr.bf16.mxu0 0
    %2581 = vmatmul.mubr.bf16.gmra.mxu0 %v2368
    %v2582 = vpop.f32.mrf.mxu0
    %v2583 = vadd.f32 %v2290, %v2582
    %v2584 = vpop.f32.mrf.mxu0
    %v2585 = vpop.f32.mrf.mxu0
    %v2586 = vadd.f32 %v2290, %v2585
    %v2587 = vpop.f32.mrf.mxu0
    %2588 = vmatprep.mubr.bf16.mxu0 0
    %2589 = vmatmul.mubr.bf16.gmra.mxu0 %v2371
    %v2590 = vpop.f32.mrf.mxu0
    %v2591 = vadd.f32 %v2290, %v2590
    %v2592 = vpop.f32.mrf.mxu0
    %v2593 = vpop.f32.mrf.mxu0
    %v2594 = vadd.f32 %v2290, %v2593
    %v2595 = vpop.f32.mrf.mxu0
    %2596 = vmatprep.mubr.bf16.mxu0 0
    %2597 = vmatmul.mubr.bf16.gmra.mxu0 %v2374
    %v2598 = vpop.f32.mrf.mxu0
    %v2599 = vadd.f32 %v2290, %v2598
    %v2600 = vpop.f32.mrf.mxu0
    %v2601 = vpop.f32.mrf.mxu0
    %v2602 = vadd.f32 %v2290, %v2601
    %v2603 = vpop.f32.mrf.mxu0
    %2604 = vmatprep.mubr.bf16.mxu0 0
    %2605 = vmatmul.mubr.bf16.gmra.mxu0 %v2377
    %v2606 = vpop.f32.mrf.mxu0
    %v2607 = vadd.f32 %v2290, %v2606
    %v2608 = vpop.f32.mrf.mxu0
    %v2609 = vpop.f32.mrf.mxu0
    %v2610 = vadd.f32 %v2290, %v2609
    %v2611 = vpop.f32.mrf.mxu0
    %2612 = vmatprep.mubr.bf16.mxu0 0
    %2613 = vmatmul.mubr.bf16.gmra.mxu0 %v2380
    %v2614 = vpop.f32.mrf.mxu0
    %v2615 = vadd.f32 %v2290, %v2614
    %v2616 = vpop.f32.mrf.mxu0
    %v2617 = vpop.f32.mrf.mxu0
    %v2618 = vadd.f32 %v2290, %v2617
    %v2619 = vpop.f32.mrf.mxu0
    %2620 = vmatprep.mubr.bf16.mxu0 0
    %2621 = vmatmul.mubr.bf16.gmra.mxu0 %v2383
    %v2622 = vpop.f32.mrf.mxu0
    %v2623 = vadd.f32 %v2290, %v2622
    %v2624 = vpop.f32.mrf.mxu0
    %v2625 = vpop.f32.mrf.mxu0
    %v2626 = vadd.f32 %v2290, %v2625
    %v2627 = vpop.f32.mrf.mxu0
    %2628 = vmatprep.mubr.bf16.mxu0 0
    %2629 = vmatmul.mubr.bf16.gmra.mxu0 %v2386
    %v2630 = vpop.f32.mrf.mxu0
    %v2631 = vadd.f32 %v2290, %v2630
    %v2632 = vpop.f32.mrf.mxu0
    %v2633 = vpop.f32.mrf.mxu0
    %v2634 = vadd.f32 %v2290, %v2633
    %v2635 = vpop.f32.mrf.mxu0
    %2636 = vmatprep.mubr.bf16.mxu0 0
    %2637 = vmatmul.mubr.bf16.gmra.mxu0 %v2389
    %v2638 = vpop.f32.mrf.mxu0
    %v2639 = vadd.f32 %v2290, %v2638
    %v2640 = vpop.f32.mrf.mxu0
    %v2641 = vpop.f32.mrf.mxu0
    %v2642 = vadd.f32 %v2290, %v2641
    %v2643 = vpop.f32.mrf.mxu0
    %2644 = vmatprep.mubr.bf16.mxu0 0
    %2645 = vmatmul.mubr.bf16.gmra.mxu0 %v2392
    %v2646 = vpop.f32.mrf.mxu0
    %v2647 = vadd.f32 %v2290, %v2646
    %v2648 = vpop.f32.mrf.mxu0
    %v2649 = vpop.f32.mrf.mxu0
    %v2650 = vadd.f32 %v2290, %v2649
    %v2651 = vpop.f32.mrf.mxu0
    %2652 = vmatprep.mubr.bf16.mxu0 0
    %2653 = vmatmul.mubr.bf16.gmra.mxu0 %v2395
    %v2654 = vpop.f32.mrf.mxu0
    %v2655 = vadd.f32 %v2290, %v2654
    %v2656 = vpop.f32.mrf.mxu0
    %v2657 = vpop.f32.mrf.mxu0
    %v2658 = vadd.f32 %v2290, %v2657
    %v2659 = vpop.f32.mrf.mxu0
    %2660 = vmatprep.mubr.bf16.mxu0 0
    %2661 = vmatmul.mubr.bf16.gmra.mxu0 %v2398
    %v2662 = vpop.f32.mrf.mxu0
    %v2663 = vadd.f32 %v2290, %v2662
    %v2664 = vpop.f32.mrf.mxu0
    %v2665 = vpop.f32.mrf.mxu0
    %v2666 = vadd.f32 %v2290, %v2665
    %v2667 = vpop.f32.mrf.mxu0
    %2668 = vmatprep.mubr.bf16.mxu0 0
    %2669 = vmatmul.mubr.bf16.gmra.mxu0 %v2401
    %v2670 = vpop.f32.mrf.mxu0
    %v2671 = vadd.f32 %v2290, %v2670
    %v2672 = vpop.f32.mrf.mxu0
    %v2673 = vpop.f32.mrf.mxu0
    %v2674 = vadd.f32 %v2290, %v2673
    %v2675 = vpop.f32.mrf.mxu0
    %2676 = vmatprep.mubr.bf16.mxu0 0
    %2677 = vmatmul.mubr.bf16.gmra.mxu0 %v2404
    %v2678 = vpop.f32.mrf.mxu0
    %v2679 = vadd.f32 %v2290, %v2678
    %v2680 = vpop.f32.mrf.mxu0
    %v2681 = vpop.f32.mrf.mxu0
    %v2682 = vadd.f32 %v2290, %v2681
    %v2683 = vpop.f32.mrf.mxu0
    %2684 = vmatprep.mubr.bf16.mxu0 0
    %2685 = vmatmul.mubr.bf16.gmra.mxu0 %v2407
    %v2686 = vpop.f32.mrf.mxu0
    %v2687 = vadd.f32 %v2290, %v2686
    %v2688 = vpop.f32.mrf.mxu0
    %v2689 = vpop.f32.mrf.mxu0
    %v2690 = vadd.f32 %v2290, %v2689
    %v2691 = vpop.f32.mrf.mxu0
    %2692 = vmatprep.mubr.bf16.mxu0 0
    %2693 = vmatmul.mubr.bf16.gmra.mxu0 %v2410
    %v2694 = vpop.f32.mrf.mxu0
    %v2695 = vadd.f32 %v2290, %v2694
    %v2696 = vpop.f32.mrf.mxu0
    %v2697 = vpop.f32.mrf.mxu0
    %v2698 = vadd.f32 %v2290, %v2697
    %v2699 = vpop.f32.mrf.mxu0
    %2700 = vdwg.mxu0
    %vm2701 = vcmp.ge.f32.partialorder %v2447, 0.0
    %vm2702 = vcmp.ge.f32.partialorder %v2450, 0.0
    %vm2703 = vcmp.ge.f32.partialorder %v2455, 0.0
    %vm2704 = vcmp.ge.f32.partialorder %v2458, 0.0
    %vm2705 = vcmp.ge.f32.partialorder %v2463, 0.0
    %vm2706 = vcmp.ge.f32.partialorder %v2466, 0.0
    %vm2707 = vcmp.ge.f32.partialorder %v2471, 0.0
    %vm2708 = vcmp.ge.f32.partialorder %v2474, 0.0
    %vm2709 = vcmp.ge.f32.partialorder %v2479, 0.0
    %vm2710 = vcmp.ge.f32.partialorder %v2482, 0.0
    %vm2711 = vcmp.ge.f32.partialorder %v2487, 0.0
    %vm2712 = vcmp.ge.f32.partialorder %v2490, 0.0
    %vm2713 = vcmp.ge.f32.partialorder %v2495, 0.0
    %vm2714 = vcmp.ge.f32.partialorder %v2498, 0.0
    %vm2715 = vcmp.ge.f32.partialorder %v2503, 0.0
    %vm2716 = vcmp.ge.f32.partialorder %v2506, 0.0
    %vm2717 = vcmp.ge.f32.partialorder %v2511, 0.0
    %vm2718 = vcmp.ge.f32.partialorder %v2514, 0.0
    %vm2719 = vcmp.ge.f32.partialorder %v2519, 0.0
    %vm2720 = vcmp.ge.f32.partialorder %v2522, 0.0
    %vm2721 = vcmp.ge.f32.partialorder %v2527, 0.0
    %vm2722 = vcmp.ge.f32.partialorder %v2530, 0.0
    %vm2723 = vcmp.ge.f32.partialorder %v2535, 0.0
    %vm2724 = vcmp.ge.f32.partialorder %v2538, 0.0
    %vm2725 = vcmp.ge.f32.partialorder %v2543, 0.0
    %vm2726 = vcmp.ge.f32.partialorder %v2546, 0.0
    %vm2727 = vcmp.ge.f32.partialorder %v2551, 0.0
    %vm2728 = vcmp.ge.f32.partialorder %v2554, 0.0
    %vm2729 = vcmp.ge.f32.partialorder %v2559, 0.0
    %vm2730 = vcmp.ge.f32.partialorder %v2562, 0.0
    %vm2731 = vcmp.ge.f32.partialorder %v2567, 0.0
    %vm2732 = vcmp.ge.f32.partialorder %v2570, 0.0
    %vm2733 = vcmp.ge.f32.partialorder %v2575, 0.0
    %vm2734 = vcmp.ge.f32.partialorder %v2578, 0.0
    %vm2735 = vcmp.ge.f32.partialorder %v2583, 0.0
    %vm2736 = vcmp.ge.f32.partialorder %v2586, 0.0
    %vm2737 = vcmp.ge.f32.partialorder %v2591, 0.0
    %vm2738 = vcmp.ge.f32.partialorder %v2594, 0.0
    %vm2739 = vcmp.ge.f32.partialorder %v2599, 0.0
    %vm2740 = vcmp.ge.f32.partialorder %v2602, 0.0
    %vm2741 = vcmp.ge.f32.partialorder %v2607, 0.0
    %vm2742 = vcmp.ge.f32.partialorder %v2610, 0.0
    %vm2743 = vcmp.ge.f32.partialorder %v2615, 0.0
    %vm2744 = vcmp.ge.f32.partialorder %v2618, 0.0
    %vm2745 = vcmp.ge.f32.partialorder %v2623, 0.0
    %vm2746 = vcmp.ge.f32.partialorder %v2626, 0.0
    %vm2747 = vcmp.ge.f32.partialorder %v2631, 0.0
    %vm2748 = vcmp.ge.f32.partialorder %v2634, 0.0
    %vm2749 = vcmp.ge.f32.partialorder %v2639, 0.0
    %vm2750 = vcmp.ge.f32.partialorder %v2642, 0.0
    %vm2751 = vcmp.ge.f32.partialorder %v2647, 0.0
    %vm2752 = vcmp.ge.f32.partialorder %v2650, 0.0
    %vm2753 = vcmp.ge.f32.partialorder %v2655, 0.0
    %vm2754 = vcmp.ge.f32.partialorder %v2658, 0.0
    %vm2755 = vcmp.ge.f32.partialorder %v2663, 0.0
    %vm2756 = vcmp.ge.f32.partialorder %v2666, 0.0
    %vm2757 = vcmp.ge.f32.partialorder %v2671, 0.0
    %vm2758 = vcmp.ge.f32.partialorder %v2674, 0.0
    %vm2759 = vcmp.ge.f32.partialorder %v2679, 0.0
    %vm2760 = vcmp.ge.f32.partialorder %v2682, 0.0
    %vm2761 = vcmp.ge.f32.partialorder %v2687, 0.0
    %vm2762 = vcmp.ge.f32.partialorder %v2690, 0.0
    %vm2763 = vcmp.ge.f32.partialorder %v2695, 0.0
    %vm2764 = vcmp.ge.f32.partialorder %v2698, 0.0
    %v2765 = vmul.f32 %v2447, 0.1
    %v2766 = vmul.f32 %v2450, 0.1
    %v2767 = vmul.f32 %v2455, 0.1
    %v2768 = vmul.f32 %v2458, 0.1
    %v2769 = vmul.f32 %v2463, 0.1
    %v2770 = vmul.f32 %v2466, 0.1
    %v2771 = vmul.f32 %v2471, 0.1
    %v2772 = vmul.f32 %v2474, 0.1
    %v2773 = vmul.f32 %v2479, 0.1
    %v2774 = vmul.f32 %v2482, 0.1
    %v2775 = vmul.f32 %v2487, 0.1
    %v2776 = vmul.f32 %v2490, 0.1
    %v2777 = vmul.f32 %v2495, 0.1
    %v2778 = vmul.f32 %v2498, 0.1
    %v2779 = vmul.f32 %v2503, 0.1
    %v2780 = vmul.f32 %v2506, 0.1
    %v2781 = vmul.f32 %v2511, 0.1
    %v2782 = vmul.f32 %v2514, 0.1
    %v2783 = vmul.f32 %v2519, 0.1
    %v2784 = vmul.f32 %v2522, 0.1
    %v2785 = vmul.f32 %v2527, 0.1
    %v2786 = vmul.f32 %v2530, 0.1
    %v2787 = vmul.f32 %v2535, 0.1
    %v2788 = vmul.f32 %v2538, 0.1
    %v2789 = vmul.f32 %v2543, 0.1
    %v2790 = vmul.f32 %v2546, 0.1
    %v2791 = vmul.f32 %v2551, 0.1
    %v2792 = vmul.f32 %v2554, 0.1
    %v2793 = vmul.f32 %v2559, 0.1
    %v2794 = vmul.f32 %v2562, 0.1
    %v2795 = vmul.f32 %v2567, 0.1
    %v2796 = vmul.f32 %v2570, 0.1
    %v2797 = vmul.f32 %v2575, 0.1
    %v2798 = vmul.f32 %v2578, 0.1
    %v2799 = vmul.f32 %v2583, 0.1
    %v2800 = vmul.f32 %v2586, 0.1
    %v2801 = vmul.f32 %v2591, 0.1
    %v2802 = vmul.f32 %v2594, 0.1
    %v2803 = vmul.f32 %v2599, 0.1
    %v2804 = vmul.f32 %v2602, 0.1
    %v2805 = vmul.f32 %v2607, 0.1
    %v2806 = vmul.f32 %v2610, 0.1
    %v2807 = vmul.f32 %v2615, 0.1
    %v2808 = vmul.f32 %v2618, 0.1
    %v2809 = vmul.f32 %v2623, 0.1
    %v2810 = vmul.f32 %v2626, 0.1
    %v2811 = vmul.f32 %v2631, 0.1
    %v2812 = vmul.f32 %v2634, 0.1
    %v2813 = vmul.f32 %v2639, 0.1
    %v2814 = vmul.f32 %v2642, 0.1
    %v2815 = vmul.f32 %v2647, 0.1
    %v2816 = vmul.f32 %v2650, 0.1
    %v2817 = vmul.f32 %v2655, 0.1
    %v2818 = vmul.f32 %v2658, 0.1
    %v2819 = vmul.f32 %v2663, 0.1
    %v2820 = vmul.f32 %v2666, 0.1
    %v2821 = vmul.f32 %v2671, 0.1
    %v2822 = vmul.f32 %v2674, 0.1
    %v2823 = vmul.f32 %v2679, 0.1
    %v2824 = vmul.f32 %v2682, 0.1
    %v2825 = vmul.f32 %v2687, 0.1
    %v2826 = vmul.f32 %v2690, 0.1
    %v2827 = vmul.f32 %v2695, 0.1
    %v2828 = vmul.f32 %v2698, 0.1
    %v2829 = vsel %vm2701, %v2447, %v2765
    %v2830 = vsel %vm2702, %v2450, %v2766
    %v2831 = vsel %vm2703, %v2455, %v2767
    %v2832 = vsel %vm2704, %v2458, %v2768
    %v2833 = vsel %vm2705, %v2463, %v2769
    %v2834 = vsel %vm2706, %v2466, %v2770
    %v2835 = vsel %vm2707, %v2471, %v2771
    %v2836 = vsel %vm2708, %v2474, %v2772
    %v2837 = vsel %vm2709, %v2479, %v2773
    %v2838 = vsel %vm2710, %v2482, %v2774
    %v2839 = vsel %vm2711, %v2487, %v2775
    %v2840 = vsel %vm2712, %v2490, %v2776
    %v2841 = vsel %vm2713, %v2495, %v2777
    %v2842 = vsel %vm2714, %v2498, %v2778
    %v2843 = vsel %vm2715, %v2503, %v2779
    %v2844 = vsel %vm2716, %v2506, %v2780
    %v2845 = vsel %vm2717, %v2511, %v2781
    %v2846 = vsel %vm2718, %v2514, %v2782
    %v2847 = vsel %vm2719, %v2519, %v2783
    %v2848 = vsel %vm2720, %v2522, %v2784
    %v2849 = vsel %vm2721, %v2527, %v2785
    %v2850 = vsel %vm2722, %v2530, %v2786
    %v2851 = vsel %vm2723, %v2535, %v2787
    %v2852 = vsel %vm2724, %v2538, %v2788
    %v2853 = vsel %vm2725, %v2543, %v2789
    %v2854 = vsel %vm2726, %v2546, %v2790
    %v2855 = vsel %vm2727, %v2551, %v2791
    %v2856 = vsel %vm2728, %v2554, %v2792
    %v2857 = vsel %vm2729, %v2559, %v2793
    %v2858 = vsel %vm2730, %v2562, %v2794
    %v2859 = vsel %vm2731, %v2567, %v2795
    %v2860 = vsel %vm2732, %v2570, %v2796
    %v2861 = vsel %vm2733, %v2575, %v2797
    %v2862 = vsel %vm2734, %v2578, %v2798
    %v2863 = vsel %vm2735, %v2583, %v2799
    %v2864 = vsel %vm2736, %v2586, %v2800
    %v2865 = vsel %vm2737, %v2591, %v2801
    %v2866 = vsel %vm2738, %v2594, %v2802
    %v2867 = vsel %vm2739, %v2599, %v2803
    %v2868 = vsel %vm2740, %v2602, %v2804
    %v2869 = vsel %vm2741, %v2607, %v2805
    %v2870 = vsel %vm2742, %v2610, %v2806
    %v2871 = vsel %vm2743, %v2615, %v2807
    %v2872 = vsel %vm2744, %v2618, %v2808
    %v2873 = vsel %vm2745, %v2623, %v2809
    %v2874 = vsel %vm2746, %v2626, %v2810
    %v2875 = vsel %vm2747, %v2631, %v2811
    %v2876 = vsel %vm2748, %v2634, %v2812
    %v2877 = vsel %vm2749, %v2639, %v2813
    %v2878 = vsel %vm2750, %v2642, %v2814
    %v2879 = vsel %vm2751, %v2647, %v2815
    %v2880 = vsel %vm2752, %v2650, %v2816
    %v2881 = vsel %vm2753, %v2655, %v2817
    %v2882 = vsel %vm2754, %v2658, %v2818
    %v2883 = vsel %vm2755, %v2663, %v2819
    %v2884 = vsel %vm2756, %v2666, %v2820
    %v2885 = vsel %vm2757, %v2671, %v2821
    %v2886 = vsel %vm2758, %v2674, %v2822
    %v2887 = vsel %vm2759, %v2679, %v2823
    %v2888 = vsel %vm2760, %v2682, %v2824
    %v2889 = vsel %vm2761, %v2687, %v2825
    %v2890 = vsel %vm2762, %v2690, %v2826
    %v2891 = vsel %vm2763, %v2695, %v2827
    %v2892 = vsel %vm2764, %v2698, %v2828
    %2893 = vst [vmem:[#allocation4] sm:$0xff] %v2829
    %2894 = vst [vmem:[#allocation4 + $0x8] sm:$0xff] %v2830
    %2895 = vst [vmem:[#allocation4 + $0x10] sm:$0xff] %v2831
    %2896 = vst [vmem:[#allocation4 + $0x18] sm:$0xff] %v2832
    %2897 = vst [vmem:[#allocation4 + $0x20] sm:$0xff] %v2833
    %2898 = vst [vmem:[#allocation4 + $0x28] sm:$0xff] %v2834
    %2899 = vst [vmem:[#allocation4 + $0x30] sm:$0xff] %v2835
    %2900 = vst [vmem:[#allocation4 + $0x38] sm:$0xff] %v2836
    %2901 = vst [vmem:[#allocation4 + $0x40] sm:$0xff] %v2837
    %2902 = vst [vmem:[#allocation4 + $0x48] sm:$0xff] %v2838
    %2903 = vst [vmem:[#allocation4 + $0x50] sm:$0xff] %v2839
    %2904 = vst [vmem:[#allocation4 + $0x58] sm:$0xff] %v2840
    %2905 = vst [vmem:[#allocation4 + $0x60] sm:$0xff] %v2841
    %2906 = vst [vmem:[#allocation4 + $0x68] sm:$0xff] %v2842
    %2907 = vst [vmem:[#allocation4 + $0x70] sm:$0xff] %v2843
    %2908 = vst [vmem:[#allocation4 + $0x78] sm:$0xff] %v2844
    %2909 = vst [vmem:[#allocation4 + $0x80] sm:$0xff] %v2845
    %2910 = vst [vmem:[#allocation4 + $0x88] sm:$0xff] %v2846
    %2911 = vst [vmem:[#allocation4 + $0x90] sm:$0xff] %v2847
    %2912 = vst [vmem:[#allocation4 + $0x98] sm:$0xff] %v2848
    %2913 = vst [vmem:[#allocation4 + $0xa0] sm:$0xff] %v2849
    %2914 = vst [vmem:[#allocation4 + $0xa8] sm:$0xff] %v2850
    %2915 = vst [vmem:[#allocation4 + $0xb0] sm:$0xff] %v2851
    %2916 = vst [vmem:[#allocation4 + $0xb8] sm:$0xff] %v2852
    %2917 = vst [vmem:[#allocation4 + $0xc0] sm:$0xff] %v2853
    %2918 = vst [vmem:[#allocation4 + $0xc8] sm:$0xff] %v2854
    %2919 = vst [vmem:[#allocation4 + $0xd0] sm:$0xff] %v2855
    %2920 = vst [vmem:[#allocation4 + $0xd8] sm:$0xff] %v2856
    %2921 = vst [vmem:[#allocation4 + $0xe0] sm:$0xff] %v2857
    %2922 = vst [vmem:[#allocation4 + $0xe8] sm:$0xff] %v2858
    %2923 = vst [vmem:[#allocation4 + $0xf0] sm:$0xff] %v2859
    %2924 = vst [vmem:[#allocation4 + $0xf8] sm:$0xff] %v2860
    %2925 = vst [vmem:[#allocation4 + $0x100] sm:$0xff] %v2861
    %2926 = vst [vmem:[#allocation4 + $0x108] sm:$0xff] %v2862
    %2927 = vst [vmem:[#allocation4 + $0x110] sm:$0xff] %v2863
    %2928 = vst [vmem:[#allocation4 + $0x118] sm:$0xff] %v2864
    %2929 = vst [vmem:[#allocation4 + $0x120] sm:$0xff] %v2865
    %2930 = vst [vmem:[#allocation4 + $0x128] sm:$0xff] %v2866
    %2931 = vst [vmem:[#allocation4 + $0x130] sm:$0xff] %v2867
    %2932 = vst [vmem:[#allocation4 + $0x138] sm:$0xff] %v2868
    %2933 = vst [vmem:[#allocation4 + $0x140] sm:$0xff] %v2869
    %2934 = vst [vmem:[#allocation4 + $0x148] sm:$0xff] %v2870
    %2935 = vst [vmem:[#allocation4 + $0x150] sm:$0xff] %v2871
    %2936 = vst [vmem:[#allocation4 + $0x158] sm:$0xff] %v2872
    %2937 = vst [vmem:[#allocation4 + $0x160] sm:$0xff] %v2873
    %2938 = vst [vmem:[#allocation4 + $0x168] sm:$0xff] %v2874
    %2939 = vst [vmem:[#allocation4 + $0x170] sm:$0xff] %v2875
    %2940 = vst [vmem:[#allocation4 + $0x178] sm:$0xff] %v2876
    %2941 = vst [vmem:[#allocation4 + $0x180] sm:$0xff] %v2877
    %2942 = vst [vmem:[#allocation4 + $0x188] sm:$0xff] %v2878
    %2943 = vst [vmem:[#allocation4 + $0x190] sm:$0xff] %v2879
    %2944 = vst [vmem:[#allocation4 + $0x198] sm:$0xff] %v2880
    %2945 = vst [vmem:[#allocation4 + $0x1a0] sm:$0xff] %v2881
    %2946 = vst [vmem:[#allocation4 + $0x1a8] sm:$0xff] %v2882
    %2947 = vst [vmem:[#allocation4 + $0x1b0] sm:$0xff] %v2883
    %2948 = vst [vmem:[#allocation4 + $0x1b8] sm:$0xff] %v2884
    %2949 = vst [vmem:[#allocation4 + $0x1c0] sm:$0xff] %v2885
    %2950 = vst [vmem:[#allocation4 + $0x1c8] sm:$0xff] %v2886
    %2951 = vst [vmem:[#allocation4 + $0x1d0] sm:$0xff] %v2887
    %2952 = vst [vmem:[#allocation4 + $0x1d8] sm:$0xff] %v2888
    %2953 = vst [vmem:[#allocation4 + $0x1e0] sm:$0xff] %v2889
    %2954 = vst [vmem:[#allocation4 + $0x1e8] sm:$0xff] %v2890
    %2955 = vst [vmem:[#allocation4 + $0x1f0] sm:$0xff] %v2891
    %2956 = vst [vmem:[#allocation4 + $0x1f8] sm:$0xff] %v2892
    // Predicated region
    $region46: #{tpu_custom_call.1} parent=1 // pred_check
      _
    $region47: #{tpu_custom_call.1} parent=1 // pred_check_branch
      %2958 = sbr.rel (0) target = $region49
    $region48: #{tpu_custom_call.1} parent=1 // pred_region
      %s2960 = ssub.s32 512, 512
      %2961 = vsyncadd [#allocation3], %s2960
      %s2963 = sshll.u32 [#allocation2], 4
      %s2964 = int_to_ptr.vmem [resolvable:$true] %s2963
      %2966 = dma.vmem_to_hbm [thread:$0]  %s2964, 512, %s11, [#allocation3]
    $region49: #{tpu_custom_call.1} parent=1 // pred_fallthru
      _
    // Predicated region
    $region50: #{tpu_custom_call.1} parent=1 // pred_check
      _
    $region51: #{tpu_custom_call.1} parent=1 // pred_check_branch
      %2968 = sbr.rel (0) target = $region53
    $region52: #{tpu_custom_call.1} parent=1 // pred_region
      %s2970 = ssub.s32 8192, 8192
      %2971 = vsyncadd [#allocation5], %s2970
      %s2972 = sshll.u32 [#allocation4], 4
      %s2973 = int_to_ptr.vmem [resolvable:$true] %s2972
      %2978 = dma.vmem_to_hbm [thread:$0]  %s2973, 8192, %s12, [#allocation5], 128, 128, 8
    $region53: #{tpu_custom_call.1} parent=1 // pred_fallthru
      _
    // Predicated region
    $region54: #{tpu_custom_call.1} parent=1 // pred_check
      _
    $region55: #{tpu_custom_call.1} parent=1 // pred_check_branch
      %2980 = sbr.rel (0) target = $region57
    $region56: #{tpu_custom_call.1} parent=1 // pred_region
      %2981 = dma.done [#allocation3], 512
    $region57: #{tpu_custom_call.1} parent=1 // pred_fallthru
      _
    // Predicated region
    $region58: #{tpu_custom_call.1} parent=1 // pred_check
      _
    $region59: #{tpu_custom_call.1} parent=1 // pred_check_branch
      %2983 = sbr.rel (0) target = $region61
    $region60: #{tpu_custom_call.1} parent=1 // pred_region
      %2984 = dma.done [#allocation5], 8192
    $region61: #{tpu_custom_call.1} parent=1 // pred_fallthru
      _
    %2985 = vsyncpa [#allocation3], 1
    %2986 = vsyncpa [#allocation5], 1

</llo_original>
